<compile_context>
chip_gen: v5e
topology: v5e:2x2
jax: 0.10.0
libtpu: 0.0.40
codegen_flags: <defaults>
</compile_context>

<pallas_src>
import functools

import jax
import jax.numpy as jnp
from jax.experimental import pallas as pl
from jax.experimental.pallas import tpu as pltpu


def _vae_kernel(
    x_ref, eps_ref,
    w_enc0_ref, w_enc1_ref, w_head_ref, w_fc1_ref, w_dec0_ref, w_dec1_ref,
    b_slab_ref,                       # packed f32 biases, one row per layer
    # outputs
    x_reconst_ref, latent_ref,        # latent = [mu | log_var | theta | 0-pad]
    *, latent_dim, bias_widths,
):
    f32 = jnp.float32
    bf16 = jnp.bfloat16
    L = latent_dim

    def bias(k):
        # row k of the packed bias slab, first bias_widths[k] lanes (static slice)
        return b_slab_ref[k:k + 1, 0:bias_widths[k]]            # (1, w) f32

    x = x_ref[...].astype(bf16)       # cast in-kernel (no wrapper-side convert)

    # ---- encoder: two Linear+ReLU layers (dropout p=0.0 -> identity) ----
    h = jnp.dot(x, w_enc0_ref[...], preferred_element_type=f32) + bias(0)
    h = jnp.maximum(h, 0.0).astype(bf16)
    h = jnp.dot(h, w_enc1_ref[...], preferred_element_type=f32) + bias(1)
    h = jnp.maximum(h, 0.0).astype(bf16)

    # ---- fused [mu | log_var] head: one (hid, 2L) matmul ----
    mulv = jnp.dot(h, w_head_ref[...], preferred_element_type=f32) + bias(2)
    mu = mulv[:, :L]
    log_var = mulv[:, L:]

    # ---- reparameterize: z = mu + eps * exp(log_var / 2) ----
    z = mu + eps_ref[...] * jnp.exp(log_var * 0.5)

    # ---- theta = fc1(z)  (collate_fn=None branch) ----
    theta = (jnp.dot(z.astype(bf16), w_fc1_ref[...], preferred_element_type=f32)
             + bias(3))

    # ---- decoder: Linear+ReLU, then final Linear (no activation) ----
    d = (jnp.dot(theta.astype(bf16), w_dec0_ref[...], preferred_element_type=f32)
         + bias(4))
    d = jnp.maximum(d, 0.0).astype(bf16)
    x_reconst = (jnp.dot(d, w_dec1_ref[...], preferred_element_type=f32)
                 + bias(5))

    x_reconst_ref[...] = x_reconst.astype(x_reconst_ref.dtype)

    # lane-dense packed latent slab: direct slice stores, no concat
    out_dtype = latent_ref.dtype
    latent_ref[:, 0:2 * L] = mulv.astype(out_dtype)
    latent_ref[:, 2 * L:3 * L] = theta.astype(out_dtype)
    pad = latent_ref.shape[1] - 3 * L
    if pad > 0:  # static
        latent_ref[:, 3 * L:] = jnp.zeros((latent_ref.shape[0], pad), out_dtype)


def prepare_params(params):
    """One-time parameter prep (call once, NOT per forward pass).

    Fuses the mu / log_var heads into one (hid, 2L) weight, casts all weights
    to bf16 for the MXU, and packs the six f32 biases into a single
    (6, max_out) slab so the kernel has 7 resident operands instead of 12.
    """
    bf16 = jnp.bfloat16
    f32 = jnp.float32

    w_mu, b_mu = params["mu"]
    w_lv, b_lv = params["logvar"]
    w_head = jnp.concatenate([w_mu, w_lv], axis=1)
    b_head = jnp.concatenate([b_mu, b_lv], axis=1)

    pairs = [params["enc0"], params["enc1"], (w_head, b_head),
             params["fc1"], params["dec0"], params["dec1"]]
    weights = tuple(w.astype(bf16) for w, _ in pairs)
    widths = tuple(int(b.shape[1]) for _, b in pairs)
    max_w = max(widths)
    rows = [jnp.pad(b.astype(f32), ((0, 0), (0, max_w - b.shape[1])))
            for _, b in pairs]
    bias_slab = jnp.concatenate(rows, axis=0)                   # (6, max_w) f32

    return dict(
        weights=weights,
        bias_slab=bias_slab,
        bias_widths=widths,
        latent_dim=int(params["fc1"][0].shape[1]),
        d_out=int(params["dec1"][0].shape[1]),
    )


def _auto_block_b(batch):
    """Per-generation batch tile.

    Single-TC chips (v5e/v6e): fewest grid steps (one block when feasible).
    Dual-TC v7x: an even number (>=2) of blocks so the "parallel" batch axis
    shards across both TensorCores.
    """
    try:
        kind = jax.devices()[0].device_kind.lower()
    except Exception:
        kind = ""
    if "v7" in kind and batch >= 16 and batch % 16 == 0:
        tb = batch // 2
        # keep tiles <= ~256 rows while preserving an even, divisible block count
        while tb > 256 and (tb // 2) % 8 == 0 and batch % (tb // 2) == 0:
            tb //= 2
        return tb
    # single TC: collapse the grid; cap the tile so f32 intermediates stay comfy
    for tb in (512, 384, 256):
        if batch > tb and batch % tb == 0:
            return tb
    return batch


def vae_forward(x, prepped, eps, *, block_b=None):
    """Run the VAE forward pass in one batch-tiled Pallas kernel.

    prepped: output of prepare_params().
    Returns (x_reconst, mu, log_var, theta), all float32.
    """
    f32 = jnp.float32
    B, D_in = x.shape
    L = prepped["latent_dim"]
    D_out = prepped["d_out"]
    weights = prepped["weights"]
    bias_slab = prepped["bias_slab"]
    bias_widths = prepped["bias_widths"]

    if x.dtype != f32:
        x = x.astype(f32)
    if eps.dtype != f32:
        eps = eps.astype(f32)

    TB = _auto_block_b(B) if block_b is None else min(block_b, B)
    n_blocks = pl.cdiv(B, TB)
    B_pad = n_blocks * TB
    if B_pad != B:
        # Fallback only (auto tile always divides B); padding is an extra HBM
        # copy of x/eps, so callers passing block_b should prefer divisors of B.
        pad = B_pad - B
        x = jnp.pad(x, ((0, pad), (0, 0)))
        eps = jnp.pad(eps, ((0, pad), (0, 0)))

    lat_pad = ((3 * L + 127) // 128) * 128     # lane-dense latent slab width

    def resident(arr):
        # whole array, pinned across the batch grid axis
        return pl.BlockSpec(arr.shape, lambda i: (0, 0))

    in_specs = (
        [pl.BlockSpec((TB, D_in), lambda i: (i, 0)),   # x (f32, cast in-kernel)
         pl.BlockSpec((TB, L), lambda i: (i, 0))]      # eps
        + [resident(w) for w in weights]
        + [resident(bias_slab)]
    )
    out_shapes = (
        jax.ShapeDtypeStruct((B_pad, D_out), f32),     # x_reconst
        jax.ShapeDtypeStruct((B_pad, lat_pad), f32),   # [mu | log_var | theta | 0]
    )
    out_specs = (
        pl.BlockSpec((TB, D_out), lambda i: (i, 0)),
        pl.BlockSpec((TB, lat_pad), lambda i: (i, 0)),
    )

    kernel = functools.partial(_vae_kernel, latent_dim=L, bias_widths=bias_widths)
    x_reconst, latent = pl.pallas_call(
        kernel,
        out_shape=out_shapes,
        grid=(n_blocks,),
        in_specs=in_specs,
        out_specs=out_specs,
        compiler_params=pltpu.CompilerParams(
            dimension_semantics=("parallel",)),
    )(x, eps, *weights, bias_slab)

    x_reconst = x_reconst[:B]
    latent = latent[:B]
    mu = latent[:, :L]
    log_var = latent[:, L:2 * L]
    theta = latent[:, 2 * L:3 * L]
    return x_reconst, mu, log_var, theta


def init_linear(key, d_in, d_out):
    """Deterministic PyTorch-style init; returns (W as (in,out), b as (1,out))."""
    kw, kb = jax.random.split(key)
    bound = 1.0 / jnp.sqrt(jnp.float32(d_in))
    w = jax.random.uniform(kw, (d_in, d_out), jnp.float32, -bound, bound)
    b = jax.random.uniform(kb, (1, d_out), jnp.float32, -bound, bound)
    return w, b


def make_params(key, encode_dims, decode_dims):
    keys = jax.random.split(key, 7)
    return {
        "enc0": init_linear(keys[0], encode_dims[0], encode_dims[1]),
        "enc1": init_linear(keys[1], encode_dims[1], encode_dims[2]),
        "mu": init_linear(keys[2], encode_dims[-2], encode_dims[-1]),
        "logvar": init_linear(keys[3], encode_dims[-2], encode_dims[-1]),
        "fc1": init_linear(keys[4], encode_dims[-1], encode_dims[-1]),
        "dec0": init_linear(keys[5], decode_dims[0], decode_dims[1]),
        "dec1": init_linear(keys[6], decode_dims[1], decode_dims[2]),
    }


def vae_forward_ref(x, params, eps):
    """Pure-JAX reference, mirroring the kernel's bf16-input / f32-accum math."""
    bf16 = jnp.bfloat16
    f32 = jnp.float32

    def lin(h, p):
        w, b = p
        return (jnp.dot(h.astype(bf16), w.astype(bf16),
                        preferred_element_type=f32) + b.astype(f32))

    h = jax.nn.relu(lin(x, params["enc0"]))
    h = jax.nn.relu(lin(h, params["enc1"]))
    mu = lin(h, params["mu"])
    log_var = lin(h, params["logvar"])
    z = mu + eps * jnp.exp(log_var / 2.0)
    theta = lin(z, params["fc1"])
    d = jax.nn.relu(lin(theta, params["dec0"]))
    x_reconst = lin(d, params["dec1"])
    return x_reconst, mu, log_var, theta


if __name__ == "__main__":
    # Small shapes consistent with the module structure:
    # encode_dims=[256, 128, 64, 32], decode_dims=[32, 128, 256], batch=256
    encode_dims = [256, 128, 64, 32]
    decode_dims = [32, 128, 256]
    B = 256

    key = jax.random.PRNGKey(0)
    k_x, k_eps, k_p = jax.random.split(key, 3)

    x = jax.random.normal(k_x, (B, encode_dims[0]), jnp.float32)
    # TODO(synk): torch.randn_like noise is drawn host-side (plain JAX) and fed
    # to the kernel; the reparameterize math itself runs in-kernel.
    eps = jax.random.normal(k_eps, (B, encode_dims[-1]), jnp.float32)
    params = make_params(k_p, encode_dims, decode_dims)

    prepped = prepare_params(params)   # one-time prep, not per forward call

    outs = vae_forward(x, prepped, eps)
    outs = jax.block_until_ready(outs)

    refs = vae_forward_ref(x, params, eps)
    names = ["x_reconst", "mu", "log_var", "theta"]
    for name, o, r in zip(names, outs, refs):
        assert o.shape == r.shape and o.dtype == r.dtype, name
        assert jnp.allclose(o, r, atol=2e-2, rtol=2e-2), f"mismatch vs reference: {name}"

    print("KERNEL_OK")
</pallas_src>

<mosaic_0001>
module attributes {stable_mosaic.version = 11 : i64} {
  func.func @_vae_kernel(%arg0: i32, %arg1: memref<256x256xf32, #tpu.memory_space<vmem>>, %arg2: memref<256x32xf32, #tpu.memory_space<vmem>>, %arg3: memref<256x128xbf16, #tpu.memory_space<vmem>>, %arg4: memref<128x64xbf16, #tpu.memory_space<vmem>>, %arg5: memref<64x64xbf16, #tpu.memory_space<vmem>>, %arg6: memref<32x32xbf16, #tpu.memory_space<vmem>>, %arg7: memref<32x128xbf16, #tpu.memory_space<vmem>>, %arg8: memref<128x256xbf16, #tpu.memory_space<vmem>>, %arg9: memref<6x256xf32, #tpu.memory_space<vmem>>, %arg10: memref<256x256xf32, #tpu.memory_space<vmem>>, %arg11: memref<256x128xf32, #tpu.memory_space<vmem>>) attributes {dimension_semantics = [#tpu.dimension_semantics<parallel>], iteration_bounds = array<i64: 1>, scalar_prefetch = 0 : i64, scratch_operands = 0 : i64, tpu.core_type = #tpu.core_type<tc>, window_params = [{transform_indices = @transform_0, window_bounds = array<i64: 256, 256>}, {transform_indices = @transform_1, window_bounds = array<i64: 256, 32>}, {pipeline_mode = #tpu.pipeline_mode<synchronous>, transform_indices = @transform_2, window_bounds = array<i64: 256, 128>}, {pipeline_mode = #tpu.pipeline_mode<synchronous>, transform_indices = @transform_3, window_bounds = array<i64: 128, 64>}, {pipeline_mode = #tpu.pipeline_mode<synchronous>, transform_indices = @transform_4, window_bounds = array<i64: 64, 64>}, {pipeline_mode = #tpu.pipeline_mode<synchronous>, transform_indices = @transform_5, window_bounds = array<i64: 32, 32>}, {pipeline_mode = #tpu.pipeline_mode<synchronous>, transform_indices = @transform_6, window_bounds = array<i64: 32, 128>}, {pipeline_mode = #tpu.pipeline_mode<synchronous>, transform_indices = @transform_7, window_bounds = array<i64: 128, 256>}, {pipeline_mode = #tpu.pipeline_mode<synchronous>, transform_indices = @transform_8, window_bounds = array<i64: 6, 256>}, {transform_indices = @transform_9, window_bounds = array<i64: 256, 256>}, {transform_indices = @transform_10, window_bounds = array<i64: 256, 128>}]} {
    %c0 = arith.constant 0 : index
    %c0_0 = arith.constant 0 : index
    %0 = vector.load %arg1[%c0, %c0_0] : memref<256x256xf32, #tpu.memory_space<vmem>>, vector<256x256xf32>
    %1 = arith.truncf %0 : vector<256x256xf32> to vector<256x256xbf16>
    %c0_1 = arith.constant 0 : index
    %c0_2 = arith.constant 0 : index
    %2 = vector.load %arg3[%c0_1, %c0_2] : memref<256x128xbf16, #tpu.memory_space<vmem>>, vector<256x128xbf16>
    %cst = arith.constant dense<0.000000e+00> : vector<256x128xf32>
    %3 = tpu.matmul %1, %2, %cst {dimension_numbers = #tpu.dot_dimension_numbers<[1], [0], [0], [1], [0, 0, 1, 1], [], []>} : vector<256x256xbf16>, vector<256x128xbf16>, vector<256x128xf32> -> vector<256x128xf32>
    %c0_3 = arith.constant 0 : index
    %c0_4 = arith.constant 0 : index
    %4 = vector.load %arg9[%c0_3, %c0_4] : memref<6x256xf32, #tpu.memory_space<vmem>>, vector<1x128xf32>
    %5 = vector.broadcast %4 : vector<1x128xf32> to vector<256x128xf32>
    %6 = arith.addf %3, %5 : vector<256x128xf32>
    %cst_5 = arith.constant 0.000000e+00 : f32
    %7 = vector.broadcast %cst_5 : f32 to vector<256x128xf32>
    %8 = arith.maximumf %6, %7 : vector<256x128xf32>
    %9 = arith.truncf %8 : vector<256x128xf32> to vector<256x128xbf16>
    %c0_6 = arith.constant 0 : index
    %c0_7 = arith.constant 0 : index
    %10 = vector.load %arg4[%c0_6, %c0_7] : memref<128x64xbf16, #tpu.memory_space<vmem>>, vector<128x64xbf16>
    %cst_8 = arith.constant dense<0.000000e+00> : vector<256x64xf32>
    %11 = tpu.matmul %9, %10, %cst_8 {dimension_numbers = #tpu.dot_dimension_numbers<[1], [0], [0], [1], [0, 0, 1, 1], [], []>} : vector<256x128xbf16>, vector<128x64xbf16>, vector<256x64xf32> -> vector<256x64xf32>
    %c1 = arith.constant 1 : index
    %c0_9 = arith.constant 0 : index
    %12 = vector.load %arg9[%c1, %c0_9] : memref<6x256xf32, #tpu.memory_space<vmem>>, vector<1x64xf32>
    %13 = vector.broadcast %12 : vector<1x64xf32> to vector<256x64xf32>
    %14 = arith.addf %11, %13 : vector<256x64xf32>
    %cst_10 = arith.constant 0.000000e+00 : f32
    %15 = vector.broadcast %cst_10 : f32 to vector<256x64xf32>
    %16 = arith.maximumf %14, %15 : vector<256x64xf32>
    %17 = arith.truncf %16 : vector<256x64xf32> to vector<256x64xbf16>
    %c0_11 = arith.constant 0 : index
    %c0_12 = arith.constant 0 : index
    %18 = vector.load %arg5[%c0_11, %c0_12] : memref<64x64xbf16, #tpu.memory_space<vmem>>, vector<64x64xbf16>
    %cst_13 = arith.constant dense<0.000000e+00> : vector<256x64xf32>
    %19 = tpu.matmul %17, %18, %cst_13 {dimension_numbers = #tpu.dot_dimension_numbers<[1], [0], [0], [1], [0, 0, 1, 1], [], []>} : vector<256x64xbf16>, vector<64x64xbf16>, vector<256x64xf32> -> vector<256x64xf32>
    %c2 = arith.constant 2 : index
    %c0_14 = arith.constant 0 : index
    %20 = vector.load %arg9[%c2, %c0_14] : memref<6x256xf32, #tpu.memory_space<vmem>>, vector<1x64xf32>
    %21 = vector.broadcast %20 : vector<1x64xf32> to vector<256x64xf32>
    %22 = arith.addf %19, %21 : vector<256x64xf32>
    %23 = vector.extract_strided_slice %22 {offsets = [0, 0], sizes = [256, 32], strides = [1, 1]} : vector<256x64xf32> to vector<256x32xf32>
    %24 = vector.extract_strided_slice %22 {offsets = [0, 32], sizes = [256, 32], strides = [1, 1]} : vector<256x64xf32> to vector<256x32xf32>
    %c0_15 = arith.constant 0 : index
    %c0_16 = arith.constant 0 : index
    %25 = vector.load %arg2[%c0_15, %c0_16] : memref<256x32xf32, #tpu.memory_space<vmem>>, vector<256x32xf32>
    %cst_17 = arith.constant 5.000000e-01 : f32
    %26 = vector.broadcast %cst_17 : f32 to vector<256x32xf32>
    %27 = arith.mulf %24, %26 : vector<256x32xf32>
    %28 = math.exp %27 : vector<256x32xf32>
    %29 = arith.mulf %25, %28 : vector<256x32xf32>
    %30 = arith.addf %23, %29 : vector<256x32xf32>
    %31 = arith.truncf %30 : vector<256x32xf32> to vector<256x32xbf16>
    %c0_18 = arith.constant 0 : index
    %c0_19 = arith.constant 0 : index
    %32 = vector.load %arg6[%c0_18, %c0_19] : memref<32x32xbf16, #tpu.memory_space<vmem>>, vector<32x32xbf16>
    %cst_20 = arith.constant dense<0.000000e+00> : vector<256x32xf32>
    %33 = tpu.matmul %31, %32, %cst_20 {dimension_numbers = #tpu.dot_dimension_numbers<[1], [0], [0], [1], [0, 0, 1, 1], [], []>} : vector<256x32xbf16>, vector<32x32xbf16>, vector<256x32xf32> -> vector<256x32xf32>
    %c3 = arith.constant 3 : index
    %c0_21 = arith.constant 0 : index
    %34 = vector.load %arg9[%c3, %c0_21] : memref<6x256xf32, #tpu.memory_space<vmem>>, vector<1x32xf32>
    %35 = vector.broadcast %34 : vector<1x32xf32> to vector<256x32xf32>
    %36 = arith.addf %33, %35 : vector<256x32xf32>
    %37 = arith.truncf %36 : vector<256x32xf32> to vector<256x32xbf16>
    %c0_22 = arith.constant 0 : index
    %c0_23 = arith.constant 0 : index
    %38 = vector.load %arg7[%c0_22, %c0_23] : memref<32x128xbf16, #tpu.memory_space<vmem>>, vector<32x128xbf16>
    %cst_24 = arith.constant dense<0.000000e+00> : vector<256x128xf32>
    %39 = tpu.matmul %37, %38, %cst_24 {dimension_numbers = #tpu.dot_dimension_numbers<[1], [0], [0], [1], [0, 0, 1, 1], [], []>} : vector<256x32xbf16>, vector<32x128xbf16>, vector<256x128xf32> -> vector<256x128xf32>
    %c4 = arith.constant 4 : index
    %c0_25 = arith.constant 0 : index
    %40 = vector.load %arg9[%c4, %c0_25] : memref<6x256xf32, #tpu.memory_space<vmem>>, vector<1x128xf32>
    %41 = vector.broadcast %40 : vector<1x128xf32> to vector<256x128xf32>
    %42 = arith.addf %39, %41 : vector<256x128xf32>
    %cst_26 = arith.constant 0.000000e+00 : f32
    %43 = vector.broadcast %cst_26 : f32 to vector<256x128xf32>
    %44 = arith.maximumf %42, %43 : vector<256x128xf32>
    %45 = arith.truncf %44 : vector<256x128xf32> to vector<256x128xbf16>
    %c0_27 = arith.constant 0 : index
    %c0_28 = arith.constant 0 : index
    %46 = vector.load %arg8[%c0_27, %c0_28] : memref<128x256xbf16, #tpu.memory_space<vmem>>, vector<128x256xbf16>
    %cst_29 = arith.constant dense<0.000000e+00> : vector<256x256xf32>
    %47 = tpu.matmul %45, %46, %cst_29 {dimension_numbers = #tpu.dot_dimension_numbers<[1], [0], [0], [1], [0, 0, 1, 1], [], []>} : vector<256x128xbf16>, vector<128x256xbf16>, vector<256x256xf32> -> vector<256x256xf32>
    %c5 = arith.constant 5 : index
    %c0_30 = arith.constant 0 : index
    %48 = vector.load %arg9[%c5, %c0_30] : memref<6x256xf32, #tpu.memory_space<vmem>>, vector<1x256xf32>
    %49 = vector.broadcast %48 : vector<1x256xf32> to vector<256x256xf32>
    %50 = arith.addf %47, %49 : vector<256x256xf32>
    %c0_31 = arith.constant 0 : index
    %c0_32 = arith.constant 0 : index
    %51 = vector.load %arg10[%c0_31, %c0_32] : memref<256x256xf32, #tpu.memory_space<vmem>>, vector<256x256xf32>
    tpu.vector_store %arg10[%c0_31, %c0_32], %50 {strides = array<i32>} : memref<256x256xf32, #tpu.memory_space<vmem>>, vector<256x256xf32>,
    %c0_33 = arith.constant 0 : index
    %c0_34 = arith.constant 0 : index
    %52 = vector.load %arg11[%c0_33, %c0_34] : memref<256x128xf32, #tpu.memory_space<vmem>>, vector<256x64xf32>
    tpu.vector_store %arg11[%c0_33, %c0_34], %22 {strides = array<i32>} : memref<256x128xf32, #tpu.memory_space<vmem>>, vector<256x64xf32>,
    %c0_35 = arith.constant 0 : index
    %c64 = arith.constant 64 : index
    %53 = vector.load %arg11[%c0_35, %c64] : memref<256x128xf32, #tpu.memory_space<vmem>>, vector<256x32xf32>
    tpu.vector_store %arg11[%c0_35, %c64], %36 {strides = array<i32>} : memref<256x128xf32, #tpu.memory_space<vmem>>, vector<256x32xf32>,
    %cst_36 = arith.constant 0.000000e+00 : f32
    %54 = vector.broadcast %cst_36 : f32 to vector<256x32xf32>
    %c0_37 = arith.constant 0 : index
    %c96 = arith.constant 96 : index
    %55 = vector.load %arg11[%c0_37, %c96] : memref<256x128xf32, #tpu.memory_space<vmem>>, vector<256x32xf32>
    tpu.vector_store %arg11[%c0_37, %c96], %54 {strides = array<i32>} : memref<256x128xf32, #tpu.memory_space<vmem>>, vector<256x32xf32>,
    return
  }
  func.func @transform_0(%arg0: i32) -> (i32, i32) {
    %c0_i32 = arith.constant 0 : i32
    %c0_i32_0 = arith.constant 0 : i32
    return %arg0, %c0_i32 : i32, i32
  }
  func.func @transform_1(%arg0: i32) -> (i32, i32) {
    %c0_i32 = arith.constant 0 : i32
    %c0_i32_0 = arith.constant 0 : i32
    return %arg0, %c0_i32 : i32, i32
  }
  func.func @transform_2(%arg0: i32) -> (i32, i32) {
    %c0_i32 = arith.constant 0 : i32
    %c0_i32_0 = arith.constant 0 : i32
    %c0_i32_1 = arith.constant 0 : i32
    return %c0_i32, %c0_i32_0 : i32, i32
  }
  func.func @transform_3(%arg0: i32) -> (i32, i32) {
    %c0_i32 = arith.constant 0 : i32
    %c0_i32_0 = arith.constant 0 : i32
    %c0_i32_1 = arith.constant 0 : i32
    return %c0_i32, %c0_i32_0 : i32, i32
  }
  func.func @transform_4(%arg0: i32) -> (i32, i32) {
    %c0_i32 = arith.constant 0 : i32
    %c0_i32_0 = arith.constant 0 : i32
    %c0_i32_1 = arith.constant 0 : i32
    return %c0_i32, %c0_i32_0 : i32, i32
  }
  func.func @transform_5(%arg0: i32) -> (i32, i32) {
    %c0_i32 = arith.constant 0 : i32
    %c0_i32_0 = arith.constant 0 : i32
    %c0_i32_1 = arith.constant 0 : i32
    return %c0_i32, %c0_i32_0 : i32, i32
  }
  func.func @transform_6(%arg0: i32) -> (i32, i32) {
    %c0_i32 = arith.constant 0 : i32
    %c0_i32_0 = arith.constant 0 : i32
    %c0_i32_1 = arith.constant 0 : i32
    return %c0_i32, %c0_i32_0 : i32, i32
  }
  func.func @transform_7(%arg0: i32) -> (i32, i32) {
    %c0_i32 = arith.constant 0 : i32
    %c0_i32_0 = arith.constant 0 : i32
    %c0_i32_1 = arith.constant 0 : i32
    return %c0_i32, %c0_i32_0 : i32, i32
  }
  func.func @transform_8(%arg0: i32) -> (i32, i32) {
    %c0_i32 = arith.constant 0 : i32
    %c0_i32_0 = arith.constant 0 : i32
    %c0_i32_1 = arith.constant 0 : i32
    return %c0_i32, %c0_i32_0 : i32, i32
  }
  func.func @transform_9(%arg0: i32) -> (i32, i32) {
    %c0_i32 = arith.constant 0 : i32
    %c0_i32_0 = arith.constant 0 : i32
    return %arg0, %c0_i32 : i32, i32
  }
  func.func @transform_10(%arg0: i32) -> (i32, i32) {
    %c0_i32 = arith.constant 0 : i32
    %c0_i32_0 = arith.constant 0 : i32
    return %arg0, %c0_i32 : i32, i32
  }
}

</mosaic_0001>

<llo_original>
// kernel: tpu_custom_call.1
$region0: #{tpu_custom_call.1}
  #allocation0 [shape = 'u32[]', space=smem, size = 0x4, offset = 0x4, fixed_abs, tag = 'smem constant byte address 0x4 - core index']
  #allocation1 [shape = 'u32[72,128]{1,0:T(1,128)}', space=vmem, size = 0x9000, scoped, tag = 'internal scratch']
  %s0 = inlined_call_operand.hbm [shape: f32[256,256], index: 0, kind: input, shape index: {}]
  %s1 = inlined_call_operand.vmem [shape: f32[256,32], index: 1, kind: input, shape index: {}]
  %s2 = inlined_call_operand.vmem [shape: bf16[256,128], index: 2, kind: input, shape index: {}]
  %s3 = inlined_call_operand.vmem [shape: bf16[128,64], index: 3, kind: input, shape index: {}]
  %s4 = inlined_call_operand.vmem [shape: bf16[64,64], index: 4, kind: input, shape index: {}]
  %s5 = inlined_call_operand.vmem [shape: bf16[32,32], index: 5, kind: input, shape index: {}]
  %s6 = inlined_call_operand.vmem [shape: bf16[32,128], index: 6, kind: input, shape index: {}]
  %s7 = inlined_call_operand.vmem [shape: bf16[128,256], index: 7, kind: input, shape index: {}]
  %s8 = inlined_call_operand.vmem [shape: f32[6,256], index: 8, kind: input, shape index: {}]
  %s9 = inlined_call_operand.hbm [shape: f32[256,256], index: 9, kind: output, shape index: {0}]
  %s10 = inlined_call_operand.hbm [shape: f32[256,128], index: 10, kind: output, shape index: {1}]
  %11 = xla_tuple %s9, %s10
  %s12 = sld [smem:[#allocation0]]
  $region58: #{tpu_custom_call.1} parent=0
    _
  %s14 = ssub.s32 1, %s12
  %s15 = scalar_select 0, %s14, %s12
  $region1: #{tpu_custom_call.1} parent=0
    #allocation2 [shape = 'u8[262144]{0}', space=vmem, size = 0x40000, scoped, tag = 'input window, operand 0, single buffered']
    #allocation3 [shape = 's32[1]{0}', space=sflag, size = 0x4, scoped, tag = 'scoped memory for tpu_custom_call.1']
    #allocation4 [shape = 's32[1]{0}', space=sflag, size = 0x4, scoped, tag = 'scoped memory for tpu_custom_call.1']
    #allocation5 [shape = 'u8[262144]{0}', space=vmem, size = 0x40000, scoped, tag = 'output window, operand 0, single buffered']
    #allocation6 [shape = 'u8[131072]{0}', space=vmem, size = 0x20000, scoped, tag = 'output window, operand 1, single buffered']
    #allocation7 [shape = 's32[1]{0}', space=sflag, size = 0x4, scoped, tag = 'scoped memory for tpu_custom_call.1']
    %16 = vsyncpa [#allocation3], 0
    %17 = vsyncpa [#allocation4], 0
    %18 = vsyncpa [#allocation7], 0
    // Predicated region
    $region2: #{tpu_custom_call.1} parent=1 // pred_check
      _
    $region3: #{tpu_custom_call.1} parent=1 // pred_check_branch
      %20 = sbr.rel (0) target = $region5
    $region4: #{tpu_custom_call.1} parent=1 // pred_region
      %22 = vsyncadd [#allocation3], 0
      %s23 = sshll.u32 %s0, 4
      %s24 = int_to_ptr.hbm [resolvable:$true] %s23
      %s25 = sshll.u32 [#allocation2], 4
      %s26 = int_to_ptr.vmem [resolvable:$true] %s25
      %31 = dma.hbm_to_vmem [thread:$0]  %s24, 8192, %s26, [#allocation3], 256, 256, 16
    $region5: #{tpu_custom_call.1} parent=1 // pred_fallthru
      _
    // Predicated region
    $region6: #{tpu_custom_call.1} parent=1 // pred_check
      _
    $region7: #{tpu_custom_call.1} parent=1 // pred_check_branch
      %33 = sbr.rel (0) target = $region9
    $region8: #{tpu_custom_call.1} parent=1 // pred_region
      _
    $region9: #{tpu_custom_call.1} parent=1 // pred_fallthru
      _
    // Predicated region
    $region10: #{tpu_custom_call.1} parent=1 // pred_check
      _
    $region11: #{tpu_custom_call.1} parent=1 // pred_check_branch
      %35 = sbr.rel (0) target = $region13
    $region12: #{tpu_custom_call.1} parent=1 // pred_region
      _
    $region13: #{tpu_custom_call.1} parent=1 // pred_fallthru
      _
    // Predicated region
    $region14: #{tpu_custom_call.1} parent=1 // pred_check
      _
    $region15: #{tpu_custom_call.1} parent=1 // pred_check_branch
      %37 = sbr.rel (0) target = $region17
    $region16: #{tpu_custom_call.1} parent=1 // pred_region
      _
    $region17: #{tpu_custom_call.1} parent=1 // pred_fallthru
      _
    // Predicated region
    $region18: #{tpu_custom_call.1} parent=1 // pred_check
      _
    $region19: #{tpu_custom_call.1} parent=1 // pred_check_branch
      %39 = sbr.rel (0) target = $region21
    $region20: #{tpu_custom_call.1} parent=1 // pred_region
      _
    $region21: #{tpu_custom_call.1} parent=1 // pred_fallthru
      _
    // Predicated region
    $region22: #{tpu_custom_call.1} parent=1 // pred_check
      _
    $region23: #{tpu_custom_call.1} parent=1 // pred_check_branch
      %41 = sbr.rel (0) target = $region25
    $region24: #{tpu_custom_call.1} parent=1 // pred_region
      _
    $region25: #{tpu_custom_call.1} parent=1 // pred_fallthru
      _
    // Predicated region
    $region26: #{tpu_custom_call.1} parent=1 // pred_check
      _
    $region27: #{tpu_custom_call.1} parent=1 // pred_check_branch
      %43 = sbr.rel (0) target = $region29
    $region28: #{tpu_custom_call.1} parent=1 // pred_region
      _
    $region29: #{tpu_custom_call.1} parent=1 // pred_fallthru
      _
    // Predicated region
    $region30: #{tpu_custom_call.1} parent=1 // pred_check
      _
    $region31: #{tpu_custom_call.1} parent=1 // pred_check_branch
      %45 = sbr.rel (0) target = $region33
    $region32: #{tpu_custom_call.1} parent=1 // pred_region
      _
    $region33: #{tpu_custom_call.1} parent=1 // pred_fallthru
      _
    // Predicated region
    $region34: #{tpu_custom_call.1} parent=1 // pred_check
      _
    $region35: #{tpu_custom_call.1} parent=1 // pred_check_branch
      %47 = sbr.rel (0) target = $region37
    $region36: #{tpu_custom_call.1} parent=1 // pred_region
      _
    $region37: #{tpu_custom_call.1} parent=1 // pred_fallthru
      _
    // Predicated region
    $region38: #{tpu_custom_call.1} parent=1 // pred_check
      _
    $region39: #{tpu_custom_call.1} parent=1 // pred_check_branch
      %49 = sbr.rel (0) target = $region41
    $region40: #{tpu_custom_call.1} parent=1 // pred_region
      %51 = dma.done [#allocation3], 8192
    $region41: #{tpu_custom_call.1} parent=1 // pred_fallthru
      _
    %v53 = vld [vmem:[#allocation2] sm:$0xff]
    %v54 = vld [vmem:[#allocation2 + $0x8] sm:$0xff]
    %v55 = vld [vmem:[#allocation2 + $0x10] sm:$0xff]
    %v56 = vld [vmem:[#allocation2 + $0x18] sm:$0xff]
    %v57 = vld [vmem:[#allocation2 + $0x20] sm:$0xff]
    %v58 = vld [vmem:[#allocation2 + $0x28] sm:$0xff]
    %v59 = vld [vmem:[#allocation2 + $0x30] sm:$0xff]
    %v60 = vld [vmem:[#allocation2 + $0x38] sm:$0xff]
    %v61 = vld [vmem:[#allocation2 + $0x40] sm:$0xff]
    %v62 = vld [vmem:[#allocation2 + $0x48] sm:$0xff]
    %v63 = vld [vmem:[#allocation2 + $0x50] sm:$0xff]
    %v64 = vld [vmem:[#allocation2 + $0x58] sm:$0xff]
    %v65 = vld [vmem:[#allocation2 + $0x60] sm:$0xff]
    %v66 = vld [vmem:[#allocation2 + $0x68] sm:$0xff]
    %v67 = vld [vmem:[#allocation2 + $0x70] sm:$0xff]
    %v68 = vld [vmem:[#allocation2 + $0x78] sm:$0xff]
    %v69 = vld [vmem:[#allocation2 + $0x80] sm:$0xff]
    %v70 = vld [vmem:[#allocation2 + $0x88] sm:$0xff]
    %v71 = vld [vmem:[#allocation2 + $0x90] sm:$0xff]
    %v72 = vld [vmem:[#allocation2 + $0x98] sm:$0xff]
    %v73 = vld [vmem:[#allocation2 + $0xa0] sm:$0xff]
    %v74 = vld [vmem:[#allocation2 + $0xa8] sm:$0xff]
    %v75 = vld [vmem:[#allocation2 + $0xb0] sm:$0xff]
    %v76 = vld [vmem:[#allocation2 + $0xb8] sm:$0xff]
    %v77 = vld [vmem:[#allocation2 + $0xc0] sm:$0xff]
    %v78 = vld [vmem:[#allocation2 + $0xc8] sm:$0xff]
    %v79 = vld [vmem:[#allocation2 + $0xd0] sm:$0xff]
    %v80 = vld [vmem:[#allocation2 + $0xd8] sm:$0xff]
    %v81 = vld [vmem:[#allocation2 + $0xe0] sm:$0xff]
    %v82 = vld [vmem:[#allocation2 + $0xe8] sm:$0xff]
    %v83 = vld [vmem:[#allocation2 + $0xf0] sm:$0xff]
    %v84 = vld [vmem:[#allocation2 + $0xf8] sm:$0xff]
    %v85 = vld [vmem:[#allocation2 + $0x100] sm:$0xff]
    %v86 = vld [vmem:[#allocation2 + $0x108] sm:$0xff]
    %v87 = vld [vmem:[#allocation2 + $0x110] sm:$0xff]
    %v88 = vld [vmem:[#allocation2 + $0x118] sm:$0xff]
    %v89 = vld [vmem:[#allocation2 + $0x120] sm:$0xff]
    %v90 = vld [vmem:[#allocation2 + $0x128] sm:$0xff]
    %v91 = vld [vmem:[#allocation2 + $0x130] sm:$0xff]
    %v92 = vld [vmem:[#allocation2 + $0x138] sm:$0xff]
    %v93 = vld [vmem:[#allocation2 + $0x140] sm:$0xff]
    %v94 = vld [vmem:[#allocation2 + $0x148] sm:$0xff]
    %v95 = vld [vmem:[#allocation2 + $0x150] sm:$0xff]
    %v96 = vld [vmem:[#allocation2 + $0x158] sm:$0xff]
    %v97 = vld [vmem:[#allocation2 + $0x160] sm:$0xff]
    %v98 = vld [vmem:[#allocation2 + $0x168] sm:$0xff]
    %v99 = vld [vmem:[#allocation2 + $0x170] sm:$0xff]
    %v100 = vld [vmem:[#allocation2 + $0x178] sm:$0xff]
    %v101 = vld [vmem:[#allocation2 + $0x180] sm:$0xff]
    %v102 = vld [vmem:[#allocation2 + $0x188] sm:$0xff]
    %v103 = vld [vmem:[#allocation2 + $0x190] sm:$0xff]
    %v104 = vld [vmem:[#allocation2 + $0x198] sm:$0xff]
    %v105 = vld [vmem:[#allocation2 + $0x1a0] sm:$0xff]
    %v106 = vld [vmem:[#allocation2 + $0x1a8] sm:$0xff]
    %v107 = vld [vmem:[#allocation2 + $0x1b0] sm:$0xff]
    %v108 = vld [vmem:[#allocation2 + $0x1b8] sm:$0xff]
    %v109 = vld [vmem:[#allocation2 + $0x1c0] sm:$0xff]
    %v110 = vld [vmem:[#allocation2 + $0x1c8] sm:$0xff]
    %v111 = vld [vmem:[#allocation2 + $0x1d0] sm:$0xff]
    %v112 = vld [vmem:[#allocation2 + $0x1d8] sm:$0xff]
    %v113 = vld [vmem:[#allocation2 + $0x1e0] sm:$0xff]
    %v114 = vld [vmem:[#allocation2 + $0x1e8] sm:$0xff]
    %v115 = vld [vmem:[#allocation2 + $0x1f0] sm:$0xff]
    %v116 = vld [vmem:[#allocation2 + $0x1f8] sm:$0xff]
    %v117 = vpack.c.bf16 %v55, %v53
    %v118 = vpack.c.bf16 %v56, %v54
    %v119 = vpack.c.bf16 %v59, %v57
    %v120 = vpack.c.bf16 %v60, %v58
    %v121 = vpack.c.bf16 %v63, %v61
    %v122 = vpack.c.bf16 %v64, %v62
    %v123 = vpack.c.bf16 %v67, %v65
    %v124 = vpack.c.bf16 %v68, %v66
    %v125 = vpack.c.bf16 %v71, %v69
    %v126 = vpack.c.bf16 %v72, %v70
    %v127 = vpack.c.bf16 %v75, %v73
    %v128 = vpack.c.bf16 %v76, %v74
    %v129 = vpack.c.bf16 %v79, %v77
    %v130 = vpack.c.bf16 %v80, %v78
    %v131 = vpack.c.bf16 %v83, %v81
    %v132 = vpack.c.bf16 %v84, %v82
    %v133 = vpack.c.bf16 %v87, %v85
    %v134 = vpack.c.bf16 %v88, %v86
    %v135 = vpack.c.bf16 %v91, %v89
    %v136 = vpack.c.bf16 %v92, %v90
    %v137 = vpack.c.bf16 %v95, %v93
    %v138 = vpack.c.bf16 %v96, %v94
    %v139 = vpack.c.bf16 %v99, %v97
    %v140 = vpack.c.bf16 %v100, %v98
    %v141 = vpack.c.bf16 %v103, %v101
    %v142 = vpack.c.bf16 %v104, %v102
    %v143 = vpack.c.bf16 %v107, %v105
    %v144 = vpack.c.bf16 %v108, %v106
    %v145 = vpack.c.bf16 %v111, %v109
    %v146 = vpack.c.bf16 %v112, %v110
    %v147 = vpack.c.bf16 %v115, %v113
    %v148 = vpack.c.bf16 %v116, %v114
    %v149 = vld [vmem:[%s2] sm:$0xf]
    %v150 = vld [vmem:[%s2 + $0x4] sm:$0xf]
    %v151 = vld [vmem:[%s2 + $0x8] sm:$0xf]
    %v152 = vld [vmem:[%s2 + $0xc] sm:$0xf]
    %v153 = vld [vmem:[%s2 + $0x10] sm:$0xf]
    %v154 = vld [vmem:[%s2 + $0x14] sm:$0xf]
    %v155 = vld [vmem:[%s2 + $0x18] sm:$0xf]
    %v156 = vld [vmem:[%s2 + $0x1c] sm:$0xf]
    %v157 = vld [vmem:[%s2 + $0x20] sm:$0xf]
    %v158 = vld [vmem:[%s2 + $0x24] sm:$0xf]
    %v159 = vld [vmem:[%s2 + $0x28] sm:$0xf]
    %v160 = vld [vmem:[%s2 + $0x2c] sm:$0xf]
    %v161 = vld [vmem:[%s2 + $0x30] sm:$0xf]
    %v162 = vld [vmem:[%s2 + $0x34] sm:$0xf]
    %v163 = vld [vmem:[%s2 + $0x38] sm:$0xf]
    %v164 = vld [vmem:[%s2 + $0x3c] sm:$0xf]
    %v165 = vld [vmem:[%s2 + $0x40] sm:$0xf]
    %v166 = vld [vmem:[%s2 + $0x44] sm:$0xf]
    %v167 = vld [vmem:[%s2 + $0x48] sm:$0xf]
    %v168 = vld [vmem:[%s2 + $0x4c] sm:$0xf]
    %v169 = vld [vmem:[%s2 + $0x50] sm:$0xf]
    %v170 = vld [vmem:[%s2 + $0x54] sm:$0xf]
    %v171 = vld [vmem:[%s2 + $0x58] sm:$0xf]
    %v172 = vld [vmem:[%s2 + $0x5c] sm:$0xf]
    %v173 = vld [vmem:[%s2 + $0x60] sm:$0xf]
    %v174 = vld [vmem:[%s2 + $0x64] sm:$0xf]
    %v175 = vld [vmem:[%s2 + $0x68] sm:$0xf]
    %v176 = vld [vmem:[%s2 + $0x6c] sm:$0xf]
    %v177 = vld [vmem:[%s2 + $0x70] sm:$0xf]
    %v178 = vld [vmem:[%s2 + $0x74] sm:$0xf]
    %v179 = vld [vmem:[%s2 + $0x78] sm:$0xf]
    %v180 = vld [vmem:[%s2 + $0x7c] sm:$0xf]
    %v181 = vld [vmem:[%s8] ss:$0 sm:$0xff]
    %v214 = vunpack.c.l.b16 %v149
    %v215 = vunpack.c.l.b16 %v150
    %v216 = vunpack.c.l.b16 %v151
    %v217 = vunpack.c.l.b16 %v152
    %v218 = vunpack.c.l.b16 %v153
    %v219 = vunpack.c.l.b16 %v154
    %v220 = vunpack.c.l.b16 %v155
    %v221 = vunpack.c.l.b16 %v156
    %v222 = vunpack.c.l.b16 %v157
    %v223 = vunpack.c.l.b16 %v158
    %v224 = vunpack.c.l.b16 %v159
    %v225 = vunpack.c.l.b16 %v160
    %v226 = vunpack.c.l.b16 %v161
    %v227 = vunpack.c.l.b16 %v162
    %v228 = vunpack.c.l.b16 %v163
    %v229 = vunpack.c.l.b16 %v164
    %v230 = vunpack.c.l.b16 %v165
    %v231 = vunpack.c.l.b16 %v166
    %v232 = vunpack.c.l.b16 %v167
    %v233 = vunpack.c.l.b16 %v168
    %v234 = vunpack.c.l.b16 %v169
    %v235 = vunpack.c.l.b16 %v170
    %v236 = vunpack.c.l.b16 %v171
    %v237 = vunpack.c.l.b16 %v172
    %v238 = vunpack.c.l.b16 %v173
    %v239 = vunpack.c.l.b16 %v174
    %v240 = vunpack.c.l.b16 %v175
    %v241 = vunpack.c.l.b16 %v176
    %v242 = vunpack.c.l.b16 %v177
    %v243 = vunpack.c.l.b16 %v178
    %v244 = vunpack.c.l.b16 %v179
    %v245 = vunpack.c.l.b16 %v180
    %v246 = vpack.c.b16 %v215, %v214
    %v247 = vpack.c.b16 %v217, %v216
    %v248 = vpack.c.b16 %v219, %v218
    %v249 = vpack.c.b16 %v221, %v220
    %v250 = vpack.c.b16 %v223, %v222
    %v251 = vpack.c.b16 %v225, %v224
    %v252 = vpack.c.b16 %v227, %v226
    %v253 = vpack.c.b16 %v229, %v228
    %v254 = vpack.c.b16 %v231, %v230
    %v255 = vpack.c.b16 %v233, %v232
    %v256 = vpack.c.b16 %v235, %v234
    %v257 = vpack.c.b16 %v237, %v236
    %v258 = vpack.c.b16 %v239, %v238
    %v259 = vpack.c.b16 %v241, %v240
    %v260 = vpack.c.b16 %v243, %v242
    %v261 = vpack.c.b16 %v245, %v244
    %278 = vmatpush.bf16.msra.mxu0 %v253
    %279 = vmatpush.bf16.msra.mxu0 %v252
    %280 = vmatpush.bf16.msra.mxu0 %v251
    %281 = vmatpush.bf16.msra.mxu0 %v250
    %282 = vmatpush.bf16.msra.mxu0 %v249
    %283 = vmatpush.bf16.msra.mxu0 %v248
    %284 = vmatpush.bf16.msra.mxu0 %v247
    %285 = vmatpush.bf16.msra.mxu0 %v246
    %286 = vmatmul.bf16.gmra.mxu0 %v117
    %v287 = vpop.f32.mrf.mxu0
    %v288 = vadd.f32 %v181, %v287
    %v289 = vpop.f32.mrf.mxu0
    %v290 = vadd.f32 %v181, %v289
    %291 = vmatmul.bf16.gmra.mxu0 %v119
    %v292 = vpop.f32.mrf.mxu0
    %v293 = vadd.f32 %v181, %v292
    %v294 = vpop.f32.mrf.mxu0
    %v295 = vadd.f32 %v181, %v294
    %296 = vmatmul.bf16.gmra.mxu0 %v121
    %v297 = vpop.f32.mrf.mxu0
    %v298 = vadd.f32 %v181, %v297
    %v299 = vpop.f32.mrf.mxu0
    %v300 = vadd.f32 %v181, %v299
    %301 = vmatmul.bf16.gmra.mxu0 %v123
    %v302 = vpop.f32.mrf.mxu0
    %v303 = vadd.f32 %v181, %v302
    %v304 = vpop.f32.mrf.mxu0
    %v305 = vadd.f32 %v181, %v304
    %306 = vmatmul.bf16.gmra.mxu0 %v125
    %v307 = vpop.f32.mrf.mxu0
    %v308 = vadd.f32 %v181, %v307
    %v309 = vpop.f32.mrf.mxu0
    %v310 = vadd.f32 %v181, %v309
    %311 = vmatmul.bf16.gmra.mxu0 %v127
    %v312 = vpop.f32.mrf.mxu0
    %v313 = vadd.f32 %v181, %v312
    %v314 = vpop.f32.mrf.mxu0
    %v315 = vadd.f32 %v181, %v314
    %316 = vmatmul.bf16.gmra.mxu0 %v129
    %v317 = vpop.f32.mrf.mxu0
    %v318 = vadd.f32 %v181, %v317
    %v319 = vpop.f32.mrf.mxu0
    %v320 = vadd.f32 %v181, %v319
    %321 = vmatmul.bf16.gmra.mxu0 %v131
    %v322 = vpop.f32.mrf.mxu0
    %v323 = vadd.f32 %v181, %v322
    %v324 = vpop.f32.mrf.mxu0
    %v325 = vadd.f32 %v181, %v324
    %326 = vmatmul.bf16.gmra.mxu0 %v133
    %v327 = vpop.f32.mrf.mxu0
    %v328 = vadd.f32 %v181, %v327
    %v329 = vpop.f32.mrf.mxu0
    %v330 = vadd.f32 %v181, %v329
    %331 = vmatmul.bf16.gmra.mxu0 %v135
    %v332 = vpop.f32.mrf.mxu0
    %v333 = vadd.f32 %v181, %v332
    %v334 = vpop.f32.mrf.mxu0
    %v335 = vadd.f32 %v181, %v334
    %336 = vmatmul.bf16.gmra.mxu0 %v137
    %v337 = vpop.f32.mrf.mxu0
    %v338 = vadd.f32 %v181, %v337
    %v339 = vpop.f32.mrf.mxu0
    %v340 = vadd.f32 %v181, %v339
    %341 = vmatmul.bf16.gmra.mxu0 %v139
    %v342 = vpop.f32.mrf.mxu0
    %v343 = vadd.f32 %v181, %v342
    %v344 = vpop.f32.mrf.mxu0
    %v345 = vadd.f32 %v181, %v344
    %346 = vmatmul.bf16.gmra.mxu0 %v141
    %v347 = vpop.f32.mrf.mxu0
    %v348 = vadd.f32 %v181, %v347
    %v349 = vpop.f32.mrf.mxu0
    %v350 = vadd.f32 %v181, %v349
    %351 = vmatmul.bf16.gmra.mxu0 %v143
    %v352 = vpop.f32.mrf.mxu0
    %v353 = vadd.f32 %v181, %v352
    %v354 = vpop.f32.mrf.mxu0
    %v355 = vadd.f32 %v181, %v354
    %356 = vmatmul.bf16.gmra.mxu0 %v145
    %v357 = vpop.f32.mrf.mxu0
    %v358 = vadd.f32 %v181, %v357
    %v359 = vpop.f32.mrf.mxu0
    %v360 = vadd.f32 %v181, %v359
    %361 = vmatmul.bf16.gmra.mxu0 %v147
    %v362 = vpop.f32.mrf.mxu0
    %v363 = vadd.f32 %v181, %v362
    %v364 = vpop.f32.mrf.mxu0
    %v365 = vadd.f32 %v181, %v364
    %366 = vdwg.mxu0
    %367 = vmatpush.bf16.msra.mxu0 %v261
    %368 = vmatpush.bf16.msra.mxu0 %v260
    %369 = vmatpush.bf16.msra.mxu0 %v259
    %370 = vmatpush.bf16.msra.mxu0 %v258
    %371 = vmatpush.bf16.msra.mxu0 %v257
    %372 = vmatpush.bf16.msra.mxu0 %v256
    %373 = vmatpush.bf16.msra.mxu0 %v255
    %374 = vmatpush.bf16.msra.mxu0 %v254
    %375 = vmatmul.bf16.gmra.mxu0 %v118
    %v376 = vpop.f32.mrf.mxu0
    %v377 = vadd.f32 %v288, %v376
    %v378 = vpop.f32.mrf.mxu0
    %v379 = vadd.f32 %v290, %v378
    %380 = vmatmul.bf16.gmra.mxu0 %v120
    %v381 = vpop.f32.mrf.mxu0
    %v382 = vadd.f32 %v293, %v381
    %v383 = vpop.f32.mrf.mxu0
    %v384 = vadd.f32 %v295, %v383
    %385 = vmatmul.bf16.gmra.mxu0 %v122
    %v386 = vpop.f32.mrf.mxu0
    %v387 = vadd.f32 %v298, %v386
    %v388 = vpop.f32.mrf.mxu0
    %v389 = vadd.f32 %v300, %v388
    %390 = vmatmul.bf16.gmra.mxu0 %v124
    %v391 = vpop.f32.mrf.mxu0
    %v392 = vadd.f32 %v303, %v391
    %v393 = vpop.f32.mrf.mxu0
    %v394 = vadd.f32 %v305, %v393
    %395 = vmatmul.bf16.gmra.mxu0 %v126
    %v396 = vpop.f32.mrf.mxu0
    %v397 = vadd.f32 %v308, %v396
    %v398 = vpop.f32.mrf.mxu0
    %v399 = vadd.f32 %v310, %v398
    %400 = vmatmul.bf16.gmra.mxu0 %v128
    %v401 = vpop.f32.mrf.mxu0
    %v402 = vadd.f32 %v313, %v401
    %v403 = vpop.f32.mrf.mxu0
    %v404 = vadd.f32 %v315, %v403
    %405 = vmatmul.bf16.gmra.mxu0 %v130
    %v406 = vpop.f32.mrf.mxu0
    %v407 = vadd.f32 %v318, %v406
    %v408 = vpop.f32.mrf.mxu0
    %v409 = vadd.f32 %v320, %v408
    %410 = vmatmul.bf16.gmra.mxu0 %v132
    %v411 = vpop.f32.mrf.mxu0
    %v412 = vadd.f32 %v323, %v411
    %v413 = vpop.f32.mrf.mxu0
    %v414 = vadd.f32 %v325, %v413
    %415 = vmatmul.bf16.gmra.mxu0 %v134
    %v416 = vpop.f32.mrf.mxu0
    %v417 = vadd.f32 %v328, %v416
    %v418 = vpop.f32.mrf.mxu0
    %v419 = vadd.f32 %v330, %v418
    %420 = vmatmul.bf16.gmra.mxu0 %v136
    %v421 = vpop.f32.mrf.mxu0
    %v422 = vadd.f32 %v333, %v421
    %v423 = vpop.f32.mrf.mxu0
    %v424 = vadd.f32 %v335, %v423
    %425 = vmatmul.bf16.gmra.mxu0 %v138
    %v426 = vpop.f32.mrf.mxu0
    %v427 = vadd.f32 %v338, %v426
    %v428 = vpop.f32.mrf.mxu0
    %v429 = vadd.f32 %v340, %v428
    %430 = vmatmul.bf16.gmra.mxu0 %v140
    %v431 = vpop.f32.mrf.mxu0
    %v432 = vadd.f32 %v343, %v431
    %v433 = vpop.f32.mrf.mxu0
    %v434 = vadd.f32 %v345, %v433
    %435 = vmatmul.bf16.gmra.mxu0 %v142
    %v436 = vpop.f32.mrf.mxu0
    %v437 = vadd.f32 %v348, %v436
    %v438 = vpop.f32.mrf.mxu0
    %v439 = vadd.f32 %v350, %v438
    %440 = vmatmul.bf16.gmra.mxu0 %v144
    %v441 = vpop.f32.mrf.mxu0
    %v442 = vadd.f32 %v353, %v441
    %v443 = vpop.f32.mrf.mxu0
    %v444 = vadd.f32 %v355, %v443
    %445 = vmatmul.bf16.gmra.mxu0 %v146
    %v446 = vpop.f32.mrf.mxu0
    %v447 = vadd.f32 %v358, %v446
    %v448 = vpop.f32.mrf.mxu0
    %v449 = vadd.f32 %v360, %v448
    %450 = vmatmul.bf16.gmra.mxu0 %v148
    %v451 = vpop.f32.mrf.mxu0
    %v452 = vadd.f32 %v363, %v451
    %v453 = vpop.f32.mrf.mxu0
    %v454 = vadd.f32 %v365, %v453
    %455 = vdwg.mxu0
    %v456 = vmax.f32 %v377, 0.0
    %v457 = vmax.f32 %v379, 0.0
    %v458 = vmax.f32 %v382, 0.0
    %v459 = vmax.f32 %v384, 0.0
    %v460 = vmax.f32 %v387, 0.0
    %v461 = vmax.f32 %v389, 0.0
    %v462 = vmax.f32 %v392, 0.0
    %v463 = vmax.f32 %v394, 0.0
    %v464 = vmax.f32 %v397, 0.0
    %v465 = vmax.f32 %v399, 0.0
    %v466 = vmax.f32 %v402, 0.0
    %v467 = vmax.f32 %v404, 0.0
    %v468 = vmax.f32 %v407, 0.0
    %v469 = vmax.f32 %v409, 0.0
    %v470 = vmax.f32 %v412, 0.0
    %v471 = vmax.f32 %v414, 0.0
    %v472 = vmax.f32 %v417, 0.0
    %v473 = vmax.f32 %v419, 0.0
    %v474 = vmax.f32 %v422, 0.0
    %v475 = vmax.f32 %v424, 0.0
    %v476 = vmax.f32 %v427, 0.0
    %v477 = vmax.f32 %v429, 0.0
    %v478 = vmax.f32 %v432, 0.0
    %v479 = vmax.f32 %v434, 0.0
    %v480 = vmax.f32 %v437, 0.0
    %v481 = vmax.f32 %v439, 0.0
    %v482 = vmax.f32 %v442, 0.0
    %v483 = vmax.f32 %v444, 0.0
    %v484 = vmax.f32 %v447, 0.0
    %v485 = vmax.f32 %v449, 0.0
    %v486 = vmax.f32 %v452, 0.0
    %v487 = vmax.f32 %v454, 0.0
    %v488 = vpack.c.bf16 %v457, %v456
    %v489 = vpack.c.bf16 %v459, %v458
    %v490 = vpack.c.bf16 %v461, %v460
    %v491 = vpack.c.bf16 %v463, %v462
    %v492 = vpack.c.bf16 %v465, %v464
    %v493 = vpack.c.bf16 %v467, %v466
    %v494 = vpack.c.bf16 %v469, %v468
    %v495 = vpack.c.bf16 %v471, %v470
    %v496 = vpack.c.bf16 %v473, %v472
    %v497 = vpack.c.bf16 %v475, %v474
    %v498 = vpack.c.bf16 %v477, %v476
    %v499 = vpack.c.bf16 %v479, %v478
    %v500 = vpack.c.bf16 %v481, %v480
    %v501 = vpack.c.bf16 %v483, %v482
    %v502 = vpack.c.bf16 %v485, %v484
    %v503 = vpack.c.bf16 %v487, %v486
    %v504 = vld [vmem:[%s3] sm:$0xf]
    %v505 = vld [vmem:[%s3 + $0x4] sm:$0xf]
    %v506 = vld [vmem:[%s3 + $0x8] sm:$0xf]
    %v507 = vld [vmem:[%s3 + $0xc] sm:$0xf]
    %v508 = vld [vmem:[%s3 + $0x10] sm:$0xf]
    %v509 = vld [vmem:[%s3 + $0x14] sm:$0xf]
    %v510 = vld [vmem:[%s3 + $0x18] sm:$0xf]
    %v511 = vld [vmem:[%s3 + $0x1c] sm:$0xf]
    %v512 = vld [vmem:[%s3 + $0x20] sm:$0xf]
    %v513 = vld [vmem:[%s3 + $0x24] sm:$0xf]
    %v514 = vld [vmem:[%s3 + $0x28] sm:$0xf]
    %v515 = vld [vmem:[%s3 + $0x2c] sm:$0xf]
    %v516 = vld [vmem:[%s3 + $0x30] sm:$0xf]
    %v517 = vld [vmem:[%s3 + $0x34] sm:$0xf]
    %v518 = vld [vmem:[%s3 + $0x38] sm:$0xf]
    %v519 = vld [vmem:[%s3 + $0x3c] sm:$0xf]
    %v520 = vld [vmem:[%s8 + $0x1] ss:$0 sm:$0xff]
    %v537 = vunpack.c.l.b16 %v504
    %v538 = vunpack.c.l.b16 %v505
    %v539 = vunpack.c.l.b16 %v506
    %v540 = vunpack.c.l.b16 %v507
    %v541 = vunpack.c.l.b16 %v508
    %v542 = vunpack.c.l.b16 %v509
    %v543 = vunpack.c.l.b16 %v510
    %v544 = vunpack.c.l.b16 %v511
    %v545 = vunpack.c.l.b16 %v512
    %v546 = vunpack.c.l.b16 %v513
    %v547 = vunpack.c.l.b16 %v514
    %v548 = vunpack.c.l.b16 %v515
    %v549 = vunpack.c.l.b16 %v516
    %v550 = vunpack.c.l.b16 %v517
    %v551 = vunpack.c.l.b16 %v518
    %v552 = vunpack.c.l.b16 %v519
    %v553 = vpack.c.b16 %v538, %v537
    %v554 = vpack.c.b16 %v540, %v539
    %v555 = vpack.c.b16 %v542, %v541
    %v556 = vpack.c.b16 %v544, %v543
    %v557 = vpack.c.b16 %v546, %v545
    %v558 = vpack.c.b16 %v548, %v547
    %v559 = vpack.c.b16 %v550, %v549
    %v560 = vpack.c.b16 %v552, %v551
    %569 = vmatpush.bf16.msra.mxu0 %v560
    %570 = vmatpush.bf16.msra.mxu0 %v559
    %571 = vmatpush.bf16.msra.mxu0 %v558
    %572 = vmatpush.bf16.msra.mxu0 %v557
    %573 = vmatpush.bf16.msra.mxu0 %v556
    %574 = vmatpush.bf16.msra.mxu0 %v555
    %575 = vmatpush.bf16.msra.mxu0 %v554
    %576 = vmatpush.bf16.msra.mxu0 %v553
    %577 = vmatmul.bf16.gmra.mxu0 %v488
    %v578 = vpop.f32.mrf.mxu0
    %v579 = vadd.f32 %v520, %v578
    %v580 = vpop.f32.mrf.mxu0
    %v581 = vadd.f32 %v520, %v580
    %582 = vmatmul.bf16.gmra.mxu0 %v489
    %v583 = vpop.f32.mrf.mxu0
    %v584 = vadd.f32 %v520, %v583
    %v585 = vpop.f32.mrf.mxu0
    %v586 = vadd.f32 %v520, %v585
    %587 = vmatmul.bf16.gmra.mxu0 %v490
    %v588 = vpop.f32.mrf.mxu0
    %v589 = vadd.f32 %v520, %v588
    %v590 = vpop.f32.mrf.mxu0
    %v591 = vadd.f32 %v520, %v590
    %592 = vmatmul.bf16.gmra.mxu0 %v491
    %v593 = vpop.f32.mrf.mxu0
    %v594 = vadd.f32 %v520, %v593
    %v595 = vpop.f32.mrf.mxu0
    %v596 = vadd.f32 %v520, %v595
    %597 = vmatmul.bf16.gmra.mxu0 %v492
    %v598 = vpop.f32.mrf.mxu0
    %v599 = vadd.f32 %v520, %v598
    %v600 = vpop.f32.mrf.mxu0
    %v601 = vadd.f32 %v520, %v600
    %602 = vmatmul.bf16.gmra.mxu0 %v493
    %v603 = vpop.f32.mrf.mxu0
    %v604 = vadd.f32 %v520, %v603
    %v605 = vpop.f32.mrf.mxu0
    %v606 = vadd.f32 %v520, %v605
    %607 = vmatmul.bf16.gmra.mxu0 %v494
    %v608 = vpop.f32.mrf.mxu0
    %v609 = vadd.f32 %v520, %v608
    %v610 = vpop.f32.mrf.mxu0
    %v611 = vadd.f32 %v520, %v610
    %612 = vmatmul.bf16.gmra.mxu0 %v495
    %v613 = vpop.f32.mrf.mxu0
    %v614 = vadd.f32 %v520, %v613
    %v615 = vpop.f32.mrf.mxu0
    %v616 = vadd.f32 %v520, %v615
    %617 = vmatmul.bf16.gmra.mxu0 %v496
    %v618 = vpop.f32.mrf.mxu0
    %v619 = vadd.f32 %v520, %v618
    %v620 = vpop.f32.mrf.mxu0
    %v621 = vadd.f32 %v520, %v620
    %622 = vmatmul.bf16.gmra.mxu0 %v497
    %v623 = vpop.f32.mrf.mxu0
    %v624 = vadd.f32 %v520, %v623
    %v625 = vpop.f32.mrf.mxu0
    %v626 = vadd.f32 %v520, %v625
    %627 = vmatmul.bf16.gmra.mxu0 %v498
    %v628 = vpop.f32.mrf.mxu0
    %v629 = vadd.f32 %v520, %v628
    %v630 = vpop.f32.mrf.mxu0
    %v631 = vadd.f32 %v520, %v630
    %632 = vmatmul.bf16.gmra.mxu0 %v499
    %v633 = vpop.f32.mrf.mxu0
    %v634 = vadd.f32 %v520, %v633
    %v635 = vpop.f32.mrf.mxu0
    %v636 = vadd.f32 %v520, %v635
    %637 = vmatmul.bf16.gmra.mxu0 %v500
    %v638 = vpop.f32.mrf.mxu0
    %v639 = vadd.f32 %v520, %v638
    %v640 = vpop.f32.mrf.mxu0
    %v641 = vadd.f32 %v520, %v640
    %642 = vmatmul.bf16.gmra.mxu0 %v501
    %v643 = vpop.f32.mrf.mxu0
    %v644 = vadd.f32 %v520, %v643
    %v645 = vpop.f32.mrf.mxu0
    %v646 = vadd.f32 %v520, %v645
    %647 = vmatmul.bf16.gmra.mxu0 %v502
    %v648 = vpop.f32.mrf.mxu0
    %v649 = vadd.f32 %v520, %v648
    %v650 = vpop.f32.mrf.mxu0
    %v651 = vadd.f32 %v520, %v650
    %652 = vmatmul.bf16.gmra.mxu0 %v503
    %v653 = vpop.f32.mrf.mxu0
    %v654 = vadd.f32 %v520, %v653
    %v655 = vpop.f32.mrf.mxu0
    %v656 = vadd.f32 %v520, %v655
    %657 = vdwg.mxu0
    %v658 = vmax.f32 %v579, 0.0
    %v659 = vmax.f32 %v581, 0.0
    %v660 = vmax.f32 %v584, 0.0
    %v661 = vmax.f32 %v586, 0.0
    %v662 = vmax.f32 %v589, 0.0
    %v663 = vmax.f32 %v591, 0.0
    %v664 = vmax.f32 %v594, 0.0
    %v665 = vmax.f32 %v596, 0.0
    %v666 = vmax.f32 %v599, 0.0
    %v667 = vmax.f32 %v601, 0.0
    %v668 = vmax.f32 %v604, 0.0
    %v669 = vmax.f32 %v606, 0.0
    %v670 = vmax.f32 %v609, 0.0
    %v671 = vmax.f32 %v611, 0.0
    %v672 = vmax.f32 %v614, 0.0
    %v673 = vmax.f32 %v616, 0.0
    %v674 = vmax.f32 %v619, 0.0
    %v675 = vmax.f32 %v621, 0.0
    %v676 = vmax.f32 %v624, 0.0
    %v677 = vmax.f32 %v626, 0.0
    %v678 = vmax.f32 %v629, 0.0
    %v679 = vmax.f32 %v631, 0.0
    %v680 = vmax.f32 %v634, 0.0
    %v681 = vmax.f32 %v636, 0.0
    %v682 = vmax.f32 %v639, 0.0
    %v683 = vmax.f32 %v641, 0.0
    %v684 = vmax.f32 %v644, 0.0
    %v685 = vmax.f32 %v646, 0.0
    %v686 = vmax.f32 %v649, 0.0
    %v687 = vmax.f32 %v651, 0.0
    %v688 = vmax.f32 %v654, 0.0
    %v689 = vmax.f32 %v656, 0.0
    %v690 = vpack.c.bf16 %v659, %v658
    %v691 = vpack.c.bf16 %v661, %v660
    %v692 = vpack.c.bf16 %v663, %v662
    %v693 = vpack.c.bf16 %v665, %v664
    %v694 = vpack.c.bf16 %v667, %v666
    %v695 = vpack.c.bf16 %v669, %v668
    %v696 = vpack.c.bf16 %v671, %v670
    %v697 = vpack.c.bf16 %v673, %v672
    %v698 = vpack.c.bf16 %v675, %v674
    %v699 = vpack.c.bf16 %v677, %v676
    %v700 = vpack.c.bf16 %v679, %v678
    %v701 = vpack.c.bf16 %v681, %v680
    %v702 = vpack.c.bf16 %v683, %v682
    %v703 = vpack.c.bf16 %v685, %v684
    %v704 = vpack.c.bf16 %v687, %v686
    %v705 = vpack.c.bf16 %v689, %v688
    %v706 = vld [vmem:[%s4] sm:$0xf]
    %v707 = vld [vmem:[%s4 + $0x4] sm:$0xf]
    %v708 = vld [vmem:[%s4 + $0x8] sm:$0xf]
    %v709 = vld [vmem:[%s4 + $0xc] sm:$0xf]
    %v710 = vld [vmem:[%s4 + $0x10] sm:$0xf]
    %v711 = vld [vmem:[%s4 + $0x14] sm:$0xf]
    %v712 = vld [vmem:[%s4 + $0x18] sm:$0xf]
    %v713 = vld [vmem:[%s4 + $0x1c] sm:$0xf]
    %v714 = vld [vmem:[%s8 + $0x2] ss:$0 sm:$0xff]
    %v723 = vunpack.c.l.b16 %v706
    %v724 = vunpack.c.l.b16 %v707
    %v725 = vunpack.c.l.b16 %v708
    %v726 = vunpack.c.l.b16 %v709
    %v727 = vunpack.c.l.b16 %v710
    %v728 = vunpack.c.l.b16 %v711
    %v729 = vunpack.c.l.b16 %v712
    %v730 = vunpack.c.l.b16 %v713
    %v731 = vpack.c.b16 %v724, %v723
    %v732 = vpack.c.b16 %v726, %v725
    %v733 = vpack.c.b16 %v728, %v727
    %v734 = vpack.c.b16 %v730, %v729
    %vm739 = vcmask 523264
    %v741 = vsel %vm739, %v690, 0
    %v744 = vsel %vm739, %v691, 0
    %v747 = vsel %vm739, %v692, 0
    %v750 = vsel %vm739, %v693, 0
    %v753 = vsel %vm739, %v694, 0
    %v756 = vsel %vm739, %v695, 0
    %v759 = vsel %vm739, %v696, 0
    %v762 = vsel %vm739, %v697, 0
    %v765 = vsel %vm739, %v698, 0
    %v768 = vsel %vm739, %v699, 0
    %v771 = vsel %vm739, %v700, 0
    %v774 = vsel %vm739, %v701, 0
    %v777 = vsel %vm739, %v702, 0
    %v780 = vsel %vm739, %v703, 0
    %v783 = vsel %vm739, %v704, 0
    %v786 = vsel %vm739, %v705, 0
    %788 = vmatpush.bf16.msra.mxu0 0
    %789 = vmatpush.bf16.msra.mxu0 0
    %790 = vmatpush.bf16.msra.mxu0 0
    %791 = vmatpush.bf16.msra.mxu0 0
    %792 = vmatpush.bf16.msra.mxu0 %v734
    %793 = vmatpush.bf16.msra.mxu0 %v733
    %794 = vmatpush.bf16.msra.mxu0 %v732
    %795 = vmatpush.bf16.msra.mxu0 %v731
    %796 = vmatmul.bf16.gmra.mxu0 %v741
    %v797 = vpop.f32.mrf.mxu0
    %v798 = vadd.f32 %v714, %v797
    %v799 = vpop.f32.mrf.mxu0
    %v800 = vadd.f32 %v714, %v799
    %801 = vmatmul.bf16.gmra.mxu0 %v744
    %v802 = vpop.f32.mrf.mxu0
    %v803 = vadd.f32 %v714, %v802
    %v804 = vpop.f32.mrf.mxu0
    %v805 = vadd.f32 %v714, %v804
    %806 = vmatmul.bf16.gmra.mxu0 %v747
    %v807 = vpop.f32.mrf.mxu0
    %v808 = vadd.f32 %v714, %v807
    %v809 = vpop.f32.mrf.mxu0
    %v810 = vadd.f32 %v714, %v809
    %811 = vmatmul.bf16.gmra.mxu0 %v750
    %v812 = vpop.f32.mrf.mxu0
    %v813 = vadd.f32 %v714, %v812
    %v814 = vpop.f32.mrf.mxu0
    %v815 = vadd.f32 %v714, %v814
    %816 = vmatmul.bf16.gmra.mxu0 %v753
    %v817 = vpop.f32.mrf.mxu0
    %v818 = vadd.f32 %v714, %v817
    %v819 = vpop.f32.mrf.mxu0
    %v820 = vadd.f32 %v714, %v819
    %821 = vmatmul.bf16.gmra.mxu0 %v756
    %v822 = vpop.f32.mrf.mxu0
    %v823 = vadd.f32 %v714, %v822
    %v824 = vpop.f32.mrf.mxu0
    %v825 = vadd.f32 %v714, %v824
    %826 = vmatmul.bf16.gmra.mxu0 %v759
    %v827 = vpop.f32.mrf.mxu0
    %v828 = vadd.f32 %v714, %v827
    %v829 = vpop.f32.mrf.mxu0
    %v830 = vadd.f32 %v714, %v829
    %831 = vmatmul.bf16.gmra.mxu0 %v762
    %v832 = vpop.f32.mrf.mxu0
    %v833 = vadd.f32 %v714, %v832
    %v834 = vpop.f32.mrf.mxu0
    %v835 = vadd.f32 %v714, %v834
    %836 = vmatmul.bf16.gmra.mxu0 %v765
    %v837 = vpop.f32.mrf.mxu0
    %v838 = vadd.f32 %v714, %v837
    %v839 = vpop.f32.mrf.mxu0
    %v840 = vadd.f32 %v714, %v839
    %841 = vmatmul.bf16.gmra.mxu0 %v768
    %v842 = vpop.f32.mrf.mxu0
    %v843 = vadd.f32 %v714, %v842
    %v844 = vpop.f32.mrf.mxu0
    %v845 = vadd.f32 %v714, %v844
    %846 = vmatmul.bf16.gmra.mxu0 %v771
    %v847 = vpop.f32.mrf.mxu0
    %v848 = vadd.f32 %v714, %v847
    %v849 = vpop.f32.mrf.mxu0
    %v850 = vadd.f32 %v714, %v849
    %851 = vmatmul.bf16.gmra.mxu0 %v774
    %v852 = vpop.f32.mrf.mxu0
    %v853 = vadd.f32 %v714, %v852
    %v854 = vpop.f32.mrf.mxu0
    %v855 = vadd.f32 %v714, %v854
    %856 = vmatmul.bf16.gmra.mxu0 %v777
    %v857 = vpop.f32.mrf.mxu0
    %v858 = vadd.f32 %v714, %v857
    %v859 = vpop.f32.mrf.mxu0
    %v860 = vadd.f32 %v714, %v859
    %861 = vmatmul.bf16.gmra.mxu0 %v780
    %v862 = vpop.f32.mrf.mxu0
    %v863 = vadd.f32 %v714, %v862
    %v864 = vpop.f32.mrf.mxu0
    %v865 = vadd.f32 %v714, %v864
    %866 = vmatmul.bf16.gmra.mxu0 %v783
    %v867 = vpop.f32.mrf.mxu0
    %v868 = vadd.f32 %v714, %v867
    %v869 = vpop.f32.mrf.mxu0
    %v870 = vadd.f32 %v714, %v869
    %871 = vmatmul.bf16.gmra.mxu0 %v786
    %v872 = vpop.f32.mrf.mxu0
    %v873 = vadd.f32 %v714, %v872
    %v874 = vpop.f32.mrf.mxu0
    %v875 = vadd.f32 %v714, %v874
    %876 = vdwg.mxu0
    %v877 = vld [vmem:[%s1] sm:$0xff]
    %v878 = vld [vmem:[%s1 + $0x8] sm:$0xff]
    %v879 = vld [vmem:[%s1 + $0x10] sm:$0xff]
    %v880 = vld [vmem:[%s1 + $0x18] sm:$0xff]
    %v881 = vld [vmem:[%s1 + $0x20] sm:$0xff]
    %v882 = vld [vmem:[%s1 + $0x28] sm:$0xff]
    %v883 = vld [vmem:[%s1 + $0x30] sm:$0xff]
    %v884 = vld [vmem:[%s1 + $0x38] sm:$0xff]
    %v885 = vld [vmem:[%s1 + $0x40] sm:$0xff]
    %v886 = vld [vmem:[%s1 + $0x48] sm:$0xff]
    %v887 = vld [vmem:[%s1 + $0x50] sm:$0xff]
    %v888 = vld [vmem:[%s1 + $0x58] sm:$0xff]
    %v889 = vld [vmem:[%s1 + $0x60] sm:$0xff]
    %v890 = vld [vmem:[%s1 + $0x68] sm:$0xff]
    %v891 = vld [vmem:[%s1 + $0x70] sm:$0xff]
    %v892 = vld [vmem:[%s1 + $0x78] sm:$0xff]
    %v893 = vld [vmem:[%s1 + $0x80] sm:$0xff]
    %v894 = vld [vmem:[%s1 + $0x88] sm:$0xff]
    %v895 = vld [vmem:[%s1 + $0x90] sm:$0xff]
    %v896 = vld [vmem:[%s1 + $0x98] sm:$0xff]
    %v897 = vld [vmem:[%s1 + $0xa0] sm:$0xff]
    %v898 = vld [vmem:[%s1 + $0xa8] sm:$0xff]
    %v899 = vld [vmem:[%s1 + $0xb0] sm:$0xff]
    %v900 = vld [vmem:[%s1 + $0xb8] sm:$0xff]
    %v901 = vld [vmem:[%s1 + $0xc0] sm:$0xff]
    %v902 = vld [vmem:[%s1 + $0xc8] sm:$0xff]
    %v903 = vld [vmem:[%s1 + $0xd0] sm:$0xff]
    %v904 = vld [vmem:[%s1 + $0xd8] sm:$0xff]
    %v905 = vld [vmem:[%s1 + $0xe0] sm:$0xff]
    %v906 = vld [vmem:[%s1 + $0xe8] sm:$0xff]
    %v907 = vld [vmem:[%s1 + $0xf0] sm:$0xff]
    %v908 = vld [vmem:[%s1 + $0xf8] sm:$0xff]
    %v909 = vmul.f32 %v798, 0.5
    %v910 = vmul.f32 %v800, 0.5
    %v911 = vmul.f32 %v803, 0.5
    %v912 = vmul.f32 %v805, 0.5
    %v913 = vmul.f32 %v808, 0.5
    %v914 = vmul.f32 %v810, 0.5
    %v915 = vmul.f32 %v813, 0.5
    %v916 = vmul.f32 %v815, 0.5
    %v917 = vmul.f32 %v818, 0.5
    %v918 = vmul.f32 %v820, 0.5
    %v919 = vmul.f32 %v823, 0.5
    %v920 = vmul.f32 %v825, 0.5
    %v921 = vmul.f32 %v828, 0.5
    %v922 = vmul.f32 %v830, 0.5
    %v923 = vmul.f32 %v833, 0.5
    %v924 = vmul.f32 %v835, 0.5
    %v925 = vmul.f32 %v838, 0.5
    %v926 = vmul.f32 %v840, 0.5
    %v927 = vmul.f32 %v843, 0.5
    %v928 = vmul.f32 %v845, 0.5
    %v929 = vmul.f32 %v848, 0.5
    %v930 = vmul.f32 %v850, 0.5
    %v931 = vmul.f32 %v853, 0.5
    %v932 = vmul.f32 %v855, 0.5
    %v933 = vmul.f32 %v858, 0.5
    %v934 = vmul.f32 %v860, 0.5
    %v935 = vmul.f32 %v863, 0.5
    %v936 = vmul.f32 %v865, 0.5
    %v937 = vmul.f32 %v868, 0.5
    %v938 = vmul.f32 %v870, 0.5
    %v939 = vmul.f32 %v873, 0.5
    %v940 = vmul.f32 %v875, 0.5
    %v941 = vmul.f32 %v909, 1.442695
    %v942 = vpow.pop %v941
    %v943 = vmul.f32 %v910, 1.442695
    %v944 = vpow.pop %v943
    %v945 = vmul.f32 %v911, 1.442695
    %v946 = vpow.pop %v945
    %v947 = vmul.f32 %v912, 1.442695
    %v948 = vpow.pop %v947
    %v949 = vmul.f32 %v913, 1.442695
    %v950 = vpow.pop %v949
    %v951 = vmul.f32 %v914, 1.442695
    %v952 = vpow.pop %v951
    %v953 = vmul.f32 %v915, 1.442695
    %v954 = vpow.pop %v953
    %v955 = vmul.f32 %v916, 1.442695
    %v956 = vpow.pop %v955
    %v957 = vmul.f32 %v917, 1.442695
    %v958 = vpow.pop %v957
    %v959 = vmul.f32 %v918, 1.442695
    %v960 = vpow.pop %v959
    %v961 = vmul.f32 %v919, 1.442695
    %v962 = vpow.pop %v961
    %v963 = vmul.f32 %v920, 1.442695
    %v964 = vpow.pop %v963
    %v965 = vmul.f32 %v921, 1.442695
    %v966 = vpow.pop %v965
    %v967 = vmul.f32 %v922, 1.442695
    %v968 = vpow.pop %v967
    %v969 = vmul.f32 %v923, 1.442695
    %v970 = vpow.pop %v969
    %v971 = vmul.f32 %v924, 1.442695
    %v972 = vpow.pop %v971
    %v973 = vmul.f32 %v925, 1.442695
    %v974 = vpow.pop %v973
    %v975 = vmul.f32 %v926, 1.442695
    %v976 = vpow.pop %v975
    %v977 = vmul.f32 %v927, 1.442695
    %v978 = vpow.pop %v977
    %v979 = vmul.f32 %v928, 1.442695
    %v980 = vpow.pop %v979
    %v981 = vmul.f32 %v929, 1.442695
    %v982 = vpow.pop %v981
    %v983 = vmul.f32 %v930, 1.442695
    %v984 = vpow.pop %v983
    %v985 = vmul.f32 %v931, 1.442695
    %v986 = vpow.pop %v985
    %v987 = vmul.f32 %v932, 1.442695
    %v988 = vpow.pop %v987
    %v989 = vmul.f32 %v933, 1.442695
    %v990 = vpow.pop %v989
    %v991 = vmul.f32 %v934, 1.442695
    %v992 = vpow.pop %v991
    %v993 = vmul.f32 %v935, 1.442695
    %v994 = vpow.pop %v993
    %v995 = vmul.f32 %v936, 1.442695
    %v996 = vpow.pop %v995
    %v997 = vmul.f32 %v937, 1.442695
    %v998 = vpow.pop %v997
    %v999 = vmul.f32 %v938, 1.442695
    %v1000 = vpow.pop %v999
    %v1001 = vmul.f32 %v939, 1.442695
    %v1002 = vpow.pop %v1001
    %v1003 = vmul.f32 %v940, 1.442695
    %v1004 = vpow.pop %v1003
    %1037 = vrot.lane.b32.xlu0 %v942, 96
    %v1038 = vpop.permute.xlu0 %1037
    %1039 = vrot.lane.b32.xlu0 %v944, 96
    %v1040 = vpop.permute.xlu0 %1039
    %1041 = vrot.lane.b32.xlu0 %v946, 96
    %v1042 = vpop.permute.xlu0 %1041
    %1043 = vrot.lane.b32.xlu0 %v948, 96
    %v1044 = vpop.permute.xlu0 %1043
    %1045 = vrot.lane.b32.xlu0 %v950, 96
    %v1046 = vpop.permute.xlu0 %1045
    %1047 = vrot.lane.b32.xlu0 %v952, 96
    %v1048 = vpop.permute.xlu0 %1047
    %1049 = vrot.lane.b32.xlu0 %v954, 96
    %v1050 = vpop.permute.xlu0 %1049
    %1051 = vrot.lane.b32.xlu0 %v956, 96
    %v1052 = vpop.permute.xlu0 %1051
    %1053 = vrot.lane.b32.xlu0 %v958, 96
    %v1054 = vpop.permute.xlu0 %1053
    %1055 = vrot.lane.b32.xlu0 %v960, 96
    %v1056 = vpop.permute.xlu0 %1055
    %1057 = vrot.lane.b32.xlu0 %v962, 96
    %v1058 = vpop.permute.xlu0 %1057
    %1059 = vrot.lane.b32.xlu0 %v964, 96
    %v1060 = vpop.permute.xlu0 %1059
    %1061 = vrot.lane.b32.xlu0 %v966, 96
    %v1062 = vpop.permute.xlu0 %1061
    %1063 = vrot.lane.b32.xlu0 %v968, 96
    %v1064 = vpop.permute.xlu0 %1063
    %1065 = vrot.lane.b32.xlu0 %v970, 96
    %v1066 = vpop.permute.xlu0 %1065
    %1067 = vrot.lane.b32.xlu0 %v972, 96
    %v1068 = vpop.permute.xlu0 %1067
    %1069 = vrot.lane.b32.xlu0 %v974, 96
    %v1070 = vpop.permute.xlu0 %1069
    %1071 = vrot.lane.b32.xlu0 %v976, 96
    %v1072 = vpop.permute.xlu0 %1071
    %1073 = vrot.lane.b32.xlu0 %v978, 96
    %v1074 = vpop.permute.xlu0 %1073
    %1075 = vrot.lane.b32.xlu0 %v980, 96
    %v1076 = vpop.permute.xlu0 %1075
    %1077 = vrot.lane.b32.xlu0 %v982, 96
    %v1078 = vpop.permute.xlu0 %1077
    %1079 = vrot.lane.b32.xlu0 %v984, 96
    %v1080 = vpop.permute.xlu0 %1079
    %1081 = vrot.lane.b32.xlu0 %v986, 96
    %v1082 = vpop.permute.xlu0 %1081
    %1083 = vrot.lane.b32.xlu0 %v988, 96
    %v1084 = vpop.permute.xlu0 %1083
    %1085 = vrot.lane.b32.xlu0 %v990, 96
    %v1086 = vpop.permute.xlu0 %1085
    %1087 = vrot.lane.b32.xlu0 %v992, 96
    %v1088 = vpop.permute.xlu0 %1087
    %1089 = vrot.lane.b32.xlu0 %v994, 96
    %v1090 = vpop.permute.xlu0 %1089
    %1091 = vrot.lane.b32.xlu0 %v996, 96
    %v1092 = vpop.permute.xlu0 %1091
    %1093 = vrot.lane.b32.xlu0 %v998, 96
    %v1094 = vpop.permute.xlu0 %1093
    %1095 = vrot.lane.b32.xlu0 %v1000, 96
    %v1096 = vpop.permute.xlu0 %1095
    %1097 = vrot.lane.b32.xlu0 %v1002, 96
    %v1098 = vpop.permute.xlu0 %1097
    %1099 = vrot.lane.b32.xlu0 %v1004, 96
    %v1100 = vpop.permute.xlu0 %1099
    %v1133 = vmul.f32 %v877, %v1038
    %v1134 = vmul.f32 %v878, %v1040
    %v1135 = vmul.f32 %v879, %v1042
    %v1136 = vmul.f32 %v880, %v1044
    %v1137 = vmul.f32 %v881, %v1046
    %v1138 = vmul.f32 %v882, %v1048
    %v1139 = vmul.f32 %v883, %v1050
    %v1140 = vmul.f32 %v884, %v1052
    %v1141 = vmul.f32 %v885, %v1054
    %v1142 = vmul.f32 %v886, %v1056
    %v1143 = vmul.f32 %v887, %v1058
    %v1144 = vmul.f32 %v888, %v1060
    %v1145 = vmul.f32 %v889, %v1062
    %v1146 = vmul.f32 %v890, %v1064
    %v1147 = vmul.f32 %v891, %v1066
    %v1148 = vmul.f32 %v892, %v1068
    %v1149 = vmul.f32 %v893, %v1070
    %v1150 = vmul.f32 %v894, %v1072
    %v1151 = vmul.f32 %v895, %v1074
    %v1152 = vmul.f32 %v896, %v1076
    %v1153 = vmul.f32 %v897, %v1078
    %v1154 = vmul.f32 %v898, %v1080
    %v1155 = vmul.f32 %v899, %v1082
    %v1156 = vmul.f32 %v900, %v1084
    %v1157 = vmul.f32 %v901, %v1086
    %v1158 = vmul.f32 %v902, %v1088
    %v1159 = vmul.f32 %v903, %v1090
    %v1160 = vmul.f32 %v904, %v1092
    %v1161 = vmul.f32 %v905, %v1094
    %v1162 = vmul.f32 %v906, %v1096
    %v1163 = vmul.f32 %v907, %v1098
    %v1164 = vmul.f32 %v908, %v1100
    %v1165 = vadd.f32 %v798, %v1133
    %v1166 = vadd.f32 %v800, %v1134
    %v1167 = vadd.f32 %v803, %v1135
    %v1168 = vadd.f32 %v805, %v1136
    %v1169 = vadd.f32 %v808, %v1137
    %v1170 = vadd.f32 %v810, %v1138
    %v1171 = vadd.f32 %v813, %v1139
    %v1172 = vadd.f32 %v815, %v1140
    %v1173 = vadd.f32 %v818, %v1141
    %v1174 = vadd.f32 %v820, %v1142
    %v1175 = vadd.f32 %v823, %v1143
    %v1176 = vadd.f32 %v825, %v1144
    %v1177 = vadd.f32 %v828, %v1145
    %v1178 = vadd.f32 %v830, %v1146
    %v1179 = vadd.f32 %v833, %v1147
    %v1180 = vadd.f32 %v835, %v1148
    %v1181 = vadd.f32 %v838, %v1149
    %v1182 = vadd.f32 %v840, %v1150
    %v1183 = vadd.f32 %v843, %v1151
    %v1184 = vadd.f32 %v845, %v1152
    %v1185 = vadd.f32 %v848, %v1153
    %v1186 = vadd.f32 %v850, %v1154
    %v1187 = vadd.f32 %v853, %v1155
    %v1188 = vadd.f32 %v855, %v1156
    %v1189 = vadd.f32 %v858, %v1157
    %v1190 = vadd.f32 %v860, %v1158
    %v1191 = vadd.f32 %v863, %v1159
    %v1192 = vadd.f32 %v865, %v1160
    %v1193 = vadd.f32 %v868, %v1161
    %v1194 = vadd.f32 %v870, %v1162
    %v1195 = vadd.f32 %v873, %v1163
    %v1196 = vadd.f32 %v875, %v1164
    %v1197 = vpack.c.bf16 %v1166, %v1165
    %v1198 = vpack.c.bf16 %v1168, %v1167
    %v1199 = vpack.c.bf16 %v1170, %v1169
    %v1200 = vpack.c.bf16 %v1172, %v1171
    %v1201 = vpack.c.bf16 %v1174, %v1173
    %v1202 = vpack.c.bf16 %v1176, %v1175
    %v1203 = vpack.c.bf16 %v1178, %v1177
    %v1204 = vpack.c.bf16 %v1180, %v1179
    %v1205 = vpack.c.bf16 %v1182, %v1181
    %v1206 = vpack.c.bf16 %v1184, %v1183
    %v1207 = vpack.c.bf16 %v1186, %v1185
    %v1208 = vpack.c.bf16 %v1188, %v1187
    %v1209 = vpack.c.bf16 %v1190, %v1189
    %v1210 = vpack.c.bf16 %v1192, %v1191
    %v1211 = vpack.c.bf16 %v1194, %v1193
    %v1212 = vpack.c.bf16 %v1196, %v1195
    %v1213 = vld [vmem:[%s5] sm:$0xf]
    %v1214 = vld [vmem:[%s5 + $0x4] sm:$0xf]
    %v1215 = vld [vmem:[%s5 + $0x8] sm:$0xf]
    %v1216 = vld [vmem:[%s5 + $0xc] sm:$0xf]
    %v1217 = vld [vmem:[%s8 + $0x3] ss:$0 sm:$0xff]
    %v1222 = vunpack.c.l.b16 %v1213
    %v1223 = vunpack.c.l.b16 %v1214
    %v1224 = vunpack.c.l.b16 %v1215
    %v1225 = vunpack.c.l.b16 %v1216
    %v1226 = vpack.c.b16 %v1223, %v1222
    %v1227 = vpack.c.b16 %v1225, %v1224
    %vm1230 = vcmask 261120
    %v1232 = vsel %vm1230, %v1197, 0
    %v1235 = vsel %vm1230, %v1198, 0
    %v1238 = vsel %vm1230, %v1199, 0
    %v1241 = vsel %vm1230, %v1200, 0
    %v1244 = vsel %vm1230, %v1201, 0
    %v1247 = vsel %vm1230, %v1202, 0
    %v1250 = vsel %vm1230, %v1203, 0
    %v1253 = vsel %vm1230, %v1204, 0
    %v1256 = vsel %vm1230, %v1205, 0
    %v1259 = vsel %vm1230, %v1206, 0
    %v1262 = vsel %vm1230, %v1207, 0
    %v1265 = vsel %vm1230, %v1208, 0
    %v1268 = vsel %vm1230, %v1209, 0
    %v1271 = vsel %vm1230, %v1210, 0
    %v1274 = vsel %vm1230, %v1211, 0
    %v1277 = vsel %vm1230, %v1212, 0
    %1279 = vmatpush.bf16.msra.mxu0 0
    %1280 = vmatpush.bf16.msra.mxu0 0
    %1281 = vmatpush.bf16.msra.mxu0 0
    %1282 = vmatpush.bf16.msra.mxu0 0
    %1283 = vmatpush.bf16.msra.mxu0 0
    %1284 = vmatpush.bf16.msra.mxu0 0
    %1285 = vmatpush.bf16.msra.mxu0 %v1227
    %1286 = vmatpush.bf16.msra.mxu0 %v1226
    %1287 = vmatmul.bf16.gmra.mxu0 %v1232
    %v1288 = vpop.f32.mrf.mxu0
    %v1289 = vadd.f32 %v1217, %v1288
    %v1290 = vpop.f32.mrf.mxu0
    %v1291 = vadd.f32 %v1217, %v1290
    %1292 = vmatmul.bf16.gmra.mxu0 %v1235
    %v1293 = vpop.f32.mrf.mxu0
    %v1294 = vadd.f32 %v1217, %v1293
    %v1295 = vpop.f32.mrf.mxu0
    %v1296 = vadd.f32 %v1217, %v1295
    %1297 = vmatmul.bf16.gmra.mxu0 %v1238
    %v1298 = vpop.f32.mrf.mxu0
    %v1299 = vadd.f32 %v1217, %v1298
    %v1300 = vpop.f32.mrf.mxu0
    %v1301 = vadd.f32 %v1217, %v1300
    %1302 = vmatmul.bf16.gmra.mxu0 %v1241
    %v1303 = vpop.f32.mrf.mxu0
    %v1304 = vadd.f32 %v1217, %v1303
    %v1305 = vpop.f32.mrf.mxu0
    %v1306 = vadd.f32 %v1217, %v1305
    %1307 = vmatmul.bf16.gmra.mxu0 %v1244
    %v1308 = vpop.f32.mrf.mxu0
    %v1309 = vadd.f32 %v1217, %v1308
    %v1310 = vpop.f32.mrf.mxu0
    %v1311 = vadd.f32 %v1217, %v1310
    %1312 = vmatmul.bf16.gmra.mxu0 %v1247
    %v1313 = vpop.f32.mrf.mxu0
    %v1314 = vadd.f32 %v1217, %v1313
    %v1315 = vpop.f32.mrf.mxu0
    %v1316 = vadd.f32 %v1217, %v1315
    %1317 = vmatmul.bf16.gmra.mxu0 %v1250
    %v1318 = vpop.f32.mrf.mxu0
    %v1319 = vadd.f32 %v1217, %v1318
    %v1320 = vpop.f32.mrf.mxu0
    %v1321 = vadd.f32 %v1217, %v1320
    %1322 = vmatmul.bf16.gmra.mxu0 %v1253
    %v1323 = vpop.f32.mrf.mxu0
    %v1324 = vadd.f32 %v1217, %v1323
    %v1325 = vpop.f32.mrf.mxu0
    %v1326 = vadd.f32 %v1217, %v1325
    %1327 = vmatmul.bf16.gmra.mxu0 %v1256
    %v1328 = vpop.f32.mrf.mxu0
    %v1329 = vadd.f32 %v1217, %v1328
    %v1330 = vpop.f32.mrf.mxu0
    %v1331 = vadd.f32 %v1217, %v1330
    %1332 = vmatmul.bf16.gmra.mxu0 %v1259
    %v1333 = vpop.f32.mrf.mxu0
    %v1334 = vadd.f32 %v1217, %v1333
    %v1335 = vpop.f32.mrf.mxu0
    %v1336 = vadd.f32 %v1217, %v1335
    %1337 = vmatmul.bf16.gmra.mxu0 %v1262
    %v1338 = vpop.f32.mrf.mxu0
    %v1339 = vadd.f32 %v1217, %v1338
    %v1340 = vpop.f32.mrf.mxu0
    %v1341 = vadd.f32 %v1217, %v1340
    %1342 = vmatmul.bf16.gmra.mxu0 %v1265
    %v1343 = vpop.f32.mrf.mxu0
    %v1344 = vadd.f32 %v1217, %v1343
    %v1345 = vpop.f32.mrf.mxu0
    %v1346 = vadd.f32 %v1217, %v1345
    %1347 = vmatmul.bf16.gmra.mxu0 %v1268
    %v1348 = vpop.f32.mrf.mxu0
    %v1349 = vadd.f32 %v1217, %v1348
    %v1350 = vpop.f32.mrf.mxu0
    %v1351 = vadd.f32 %v1217, %v1350
    %1352 = vmatmul.bf16.gmra.mxu0 %v1271
    %v1353 = vpop.f32.mrf.mxu0
    %v1354 = vadd.f32 %v1217, %v1353
    %v1355 = vpop.f32.mrf.mxu0
    %v1356 = vadd.f32 %v1217, %v1355
    %1357 = vmatmul.bf16.gmra.mxu0 %v1274
    %v1358 = vpop.f32.mrf.mxu0
    %v1359 = vadd.f32 %v1217, %v1358
    %v1360 = vpop.f32.mrf.mxu0
    %v1361 = vadd.f32 %v1217, %v1360
    %1362 = vmatmul.bf16.gmra.mxu0 %v1277
    %v1363 = vpop.f32.mrf.mxu0
    %v1364 = vadd.f32 %v1217, %v1363
    %v1365 = vpop.f32.mrf.mxu0
    %v1366 = vadd.f32 %v1217, %v1365
    %1367 = vdwg.mxu0
    %v1368 = vpack.c.bf16 %v1291, %v1289
    %v1369 = vpack.c.bf16 %v1296, %v1294
    %v1370 = vpack.c.bf16 %v1301, %v1299
    %v1371 = vpack.c.bf16 %v1306, %v1304
    %v1372 = vpack.c.bf16 %v1311, %v1309
    %v1373 = vpack.c.bf16 %v1316, %v1314
    %v1374 = vpack.c.bf16 %v1321, %v1319
    %v1375 = vpack.c.bf16 %v1326, %v1324
    %v1376 = vpack.c.bf16 %v1331, %v1329
    %v1377 = vpack.c.bf16 %v1336, %v1334
    %v1378 = vpack.c.bf16 %v1341, %v1339
    %v1379 = vpack.c.bf16 %v1346, %v1344
    %v1380 = vpack.c.bf16 %v1351, %v1349
    %v1381 = vpack.c.bf16 %v1356, %v1354
    %v1382 = vpack.c.bf16 %v1361, %v1359
    %v1383 = vpack.c.bf16 %v1366, %v1364
    %v1384 = vld [vmem:[%s6] sm:$0xf]
    %v1385 = vld [vmem:[%s6 + $0x4] sm:$0xf]
    %v1386 = vld [vmem:[%s6 + $0x8] sm:$0xf]
    %v1387 = vld [vmem:[%s6 + $0xc] sm:$0xf]
    %v1388 = vld [vmem:[%s8 + $0x4] ss:$0 sm:$0xff]
    %v1393 = vunpack.c.l.b16 %v1384
    %v1394 = vunpack.c.l.b16 %v1385
    %v1395 = vunpack.c.l.b16 %v1386
    %v1396 = vunpack.c.l.b16 %v1387
    %v1397 = vpack.c.b16 %v1394, %v1393
    %v1398 = vpack.c.b16 %v1396, %v1395
    %v1402 = vsel %vm1230, %v1368, 0
    %v1405 = vsel %vm1230, %v1369, 0
    %v1408 = vsel %vm1230, %v1370, 0
    %v1411 = vsel %vm1230, %v1371, 0
    %v1414 = vsel %vm1230, %v1372, 0
    %v1417 = vsel %vm1230, %v1373, 0
    %v1420 = vsel %vm1230, %v1374, 0
    %v1423 = vsel %vm1230, %v1375, 0
    %v1426 = vsel %vm1230, %v1376, 0
    %v1429 = vsel %vm1230, %v1377, 0
    %v1432 = vsel %vm1230, %v1378, 0
    %v1435 = vsel %vm1230, %v1379, 0
    %v1438 = vsel %vm1230, %v1380, 0
    %v1441 = vsel %vm1230, %v1381, 0
    %v1444 = vsel %vm1230, %v1382, 0
    %v1447 = vsel %vm1230, %v1383, 0
    %1449 = vmatpush.bf16.msra.mxu0 0
    %1450 = vmatpush.bf16.msra.mxu0 0
    %1451 = vmatpush.bf16.msra.mxu0 0
    %1452 = vmatpush.bf16.msra.mxu0 0
    %1453 = vmatpush.bf16.msra.mxu0 0
    %1454 = vmatpush.bf16.msra.mxu0 0
    %1455 = vmatpush.bf16.msra.mxu0 %v1398
    %1456 = vmatpush.bf16.msra.mxu0 %v1397
    %1457 = vmatmul.bf16.gmra.mxu0 %v1402
    %v1458 = vpop.f32.mrf.mxu0
    %v1459 = vadd.f32 %v1388, %v1458
    %v1460 = vpop.f32.mrf.mxu0
    %v1461 = vadd.f32 %v1388, %v1460
    %1462 = vmatmul.bf16.gmra.mxu0 %v1405
    %v1463 = vpop.f32.mrf.mxu0
    %v1464 = vadd.f32 %v1388, %v1463
    %v1465 = vpop.f32.mrf.mxu0
    %v1466 = vadd.f32 %v1388, %v1465
    %1467 = vmatmul.bf16.gmra.mxu0 %v1408
    %v1468 = vpop.f32.mrf.mxu0
    %v1469 = vadd.f32 %v1388, %v1468
    %v1470 = vpop.f32.mrf.mxu0
    %v1471 = vadd.f32 %v1388, %v1470
    %1472 = vmatmul.bf16.gmra.mxu0 %v1411
    %v1473 = vpop.f32.mrf.mxu0
    %v1474 = vadd.f32 %v1388, %v1473
    %v1475 = vpop.f32.mrf.mxu0
    %v1476 = vadd.f32 %v1388, %v1475
    %1477 = vmatmul.bf16.gmra.mxu0 %v1414
    %v1478 = vpop.f32.mrf.mxu0
    %v1479 = vadd.f32 %v1388, %v1478
    %v1480 = vpop.f32.mrf.mxu0
    %v1481 = vadd.f32 %v1388, %v1480
    %1482 = vmatmul.bf16.gmra.mxu0 %v1417
    %v1483 = vpop.f32.mrf.mxu0
    %v1484 = vadd.f32 %v1388, %v1483
    %v1485 = vpop.f32.mrf.mxu0
    %v1486 = vadd.f32 %v1388, %v1485
    %1487 = vmatmul.bf16.gmra.mxu0 %v1420
    %v1488 = vpop.f32.mrf.mxu0
    %v1489 = vadd.f32 %v1388, %v1488
    %v1490 = vpop.f32.mrf.mxu0
    %v1491 = vadd.f32 %v1388, %v1490
    %1492 = vmatmul.bf16.gmra.mxu0 %v1423
    %v1493 = vpop.f32.mrf.mxu0
    %v1494 = vadd.f32 %v1388, %v1493
    %v1495 = vpop.f32.mrf.mxu0
    %v1496 = vadd.f32 %v1388, %v1495
    %1497 = vmatmul.bf16.gmra.mxu0 %v1426
    %v1498 = vpop.f32.mrf.mxu0
    %v1499 = vadd.f32 %v1388, %v1498
    %v1500 = vpop.f32.mrf.mxu0
    %v1501 = vadd.f32 %v1388, %v1500
    %1502 = vmatmul.bf16.gmra.mxu0 %v1429
    %v1503 = vpop.f32.mrf.mxu0
    %v1504 = vadd.f32 %v1388, %v1503
    %v1505 = vpop.f32.mrf.mxu0
    %v1506 = vadd.f32 %v1388, %v1505
    %1507 = vmatmul.bf16.gmra.mxu0 %v1432
    %v1508 = vpop.f32.mrf.mxu0
    %v1509 = vadd.f32 %v1388, %v1508
    %v1510 = vpop.f32.mrf.mxu0
    %v1511 = vadd.f32 %v1388, %v1510
    %1512 = vmatmul.bf16.gmra.mxu0 %v1435
    %v1513 = vpop.f32.mrf.mxu0
    %v1514 = vadd.f32 %v1388, %v1513
    %v1515 = vpop.f32.mrf.mxu0
    %v1516 = vadd.f32 %v1388, %v1515
    %1517 = vmatmul.bf16.gmra.mxu0 %v1438
    %v1518 = vpop.f32.mrf.mxu0
    %v1519 = vadd.f32 %v1388, %v1518
    %v1520 = vpop.f32.mrf.mxu0
    %v1521 = vadd.f32 %v1388, %v1520
    %1522 = vmatmul.bf16.gmra.mxu0 %v1441
    %v1523 = vpop.f32.mrf.mxu0
    %v1524 = vadd.f32 %v1388, %v1523
    %v1525 = vpop.f32.mrf.mxu0
    %v1526 = vadd.f32 %v1388, %v1525
    %1527 = vmatmul.bf16.gmra.mxu0 %v1444
    %v1528 = vpop.f32.mrf.mxu0
    %v1529 = vadd.f32 %v1388, %v1528
    %v1530 = vpop.f32.mrf.mxu0
    %v1531 = vadd.f32 %v1388, %v1530
    %1532 = vmatmul.bf16.gmra.mxu0 %v1447
    %v1533 = vpop.f32.mrf.mxu0
    %v1534 = vadd.f32 %v1388, %v1533
    %v1535 = vpop.f32.mrf.mxu0
    %v1536 = vadd.f32 %v1388, %v1535
    %1537 = vdwg.mxu0
    %v1538 = vmax.f32 %v1459, 0.0
    %v1539 = vmax.f32 %v1461, 0.0
    %v1540 = vmax.f32 %v1464, 0.0
    %v1541 = vmax.f32 %v1466, 0.0
    %v1542 = vmax.f32 %v1469, 0.0
    %v1543 = vmax.f32 %v1471, 0.0
    %v1544 = vmax.f32 %v1474, 0.0
    %v1545 = vmax.f32 %v1476, 0.0
    %v1546 = vmax.f32 %v1479, 0.0
    %v1547 = vmax.f32 %v1481, 0.0
    %v1548 = vmax.f32 %v1484, 0.0
    %v1549 = vmax.f32 %v1486, 0.0
    %v1550 = vmax.f32 %v1489, 0.0
    %v1551 = vmax.f32 %v1491, 0.0
    %v1552 = vmax.f32 %v1494, 0.0
    %v1553 = vmax.f32 %v1496, 0.0
    %v1554 = vmax.f32 %v1499, 0.0
    %v1555 = vmax.f32 %v1501, 0.0
    %v1556 = vmax.f32 %v1504, 0.0
    %v1557 = vmax.f32 %v1506, 0.0
    %v1558 = vmax.f32 %v1509, 0.0
    %v1559 = vmax.f32 %v1511, 0.0
    %v1560 = vmax.f32 %v1514, 0.0
    %v1561 = vmax.f32 %v1516, 0.0
    %v1562 = vmax.f32 %v1519, 0.0
    %v1563 = vmax.f32 %v1521, 0.0
    %v1564 = vmax.f32 %v1524, 0.0
    %v1565 = vmax.f32 %v1526, 0.0
    %v1566 = vmax.f32 %v1529, 0.0
    %v1567 = vmax.f32 %v1531, 0.0
    %v1568 = vmax.f32 %v1534, 0.0
    %v1569 = vmax.f32 %v1536, 0.0
    %v1570 = vpack.c.bf16 %v1539, %v1538
    %v1571 = vpack.c.bf16 %v1541, %v1540
    %v1572 = vpack.c.bf16 %v1543, %v1542
    %v1573 = vpack.c.bf16 %v1545, %v1544
    %v1574 = vpack.c.bf16 %v1547, %v1546
    %v1575 = vpack.c.bf16 %v1549, %v1548
    %v1576 = vpack.c.bf16 %v1551, %v1550
    %v1577 = vpack.c.bf16 %v1553, %v1552
    %v1578 = vpack.c.bf16 %v1555, %v1554
    %v1579 = vpack.c.bf16 %v1557, %v1556
    %v1580 = vpack.c.bf16 %v1559, %v1558
    %v1581 = vpack.c.bf16 %v1561, %v1560
    %v1582 = vpack.c.bf16 %v1563, %v1562
    %v1583 = vpack.c.bf16 %v1565, %v1564
    %v1584 = vpack.c.bf16 %v1567, %v1566
    %v1585 = vpack.c.bf16 %v1569, %v1568
    %v1586 = vld [vmem:[%s7] sm:$0xff]
    %v1587 = vld [vmem:[%s7 + $0x8] sm:$0xff]
    %v1588 = vld [vmem:[%s7 + $0x10] sm:$0xff]
    %v1589 = vld [vmem:[%s7 + $0x18] sm:$0xff]
    %v1590 = vld [vmem:[%s7 + $0x20] sm:$0xff]
    %v1591 = vld [vmem:[%s7 + $0x28] sm:$0xff]
    %v1592 = vld [vmem:[%s7 + $0x30] sm:$0xff]
    %v1593 = vld [vmem:[%s7 + $0x38] sm:$0xff]
    %v1594 = vld [vmem:[%s7 + $0x40] sm:$0xff]
    %v1595 = vld [vmem:[%s7 + $0x48] sm:$0xff]
    %v1596 = vld [vmem:[%s7 + $0x50] sm:$0xff]
    %v1597 = vld [vmem:[%s7 + $0x58] sm:$0xff]
    %v1598 = vld [vmem:[%s7 + $0x60] sm:$0xff]
    %v1599 = vld [vmem:[%s7 + $0x68] sm:$0xff]
    %v1600 = vld [vmem:[%s7 + $0x70] sm:$0xff]
    %v1601 = vld [vmem:[%s7 + $0x78] sm:$0xff]
    %s1602 = scalar_lea.vmem %s8, 5
    %v1603 = vld [vmem:[%s1602] ss:$8 sm:$0x3]
    %v1605 = vperm.slane %v1603, 0
    %v1606 = vperm.slane %v1603, 1
    %v1625 = vunpack.c.l.b16 %v1586
    %v1626 = vunpack.c.h.b16 %v1586
    %v1627 = vunpack.c.l.b16 %v1587
    %v1628 = vunpack.c.h.b16 %v1587
    %v1629 = vunpack.c.l.b16 %v1588
    %v1630 = vunpack.c.h.b16 %v1588
    %v1631 = vunpack.c.l.b16 %v1589
    %v1632 = vunpack.c.h.b16 %v1589
    %v1633 = vunpack.c.l.b16 %v1590
    %v1634 = vunpack.c.h.b16 %v1590
    %v1635 = vunpack.c.l.b16 %v1591
    %v1636 = vunpack.c.h.b16 %v1591
    %v1637 = vunpack.c.l.b16 %v1592
    %v1638 = vunpack.c.h.b16 %v1592
    %v1639 = vunpack.c.l.b16 %v1593
    %v1640 = vunpack.c.h.b16 %v1593
    %v1641 = vunpack.c.l.b16 %v1594
    %v1642 = vunpack.c.h.b16 %v1594
    %v1643 = vunpack.c.l.b16 %v1595
    %v1644 = vunpack.c.h.b16 %v1595
    %v1645 = vunpack.c.l.b16 %v1596
    %v1646 = vunpack.c.h.b16 %v1596
    %v1647 = vunpack.c.l.b16 %v1597
    %v1648 = vunpack.c.h.b16 %v1597
    %v1649 = vunpack.c.l.b16 %v1598
    %v1650 = vunpack.c.h.b16 %v1598
    %v1651 = vunpack.c.l.b16 %v1599
    %v1652 = vunpack.c.h.b16 %v1599
    %v1653 = vunpack.c.l.b16 %v1600
    %v1654 = vunpack.c.h.b16 %v1600
    %v1655 = vunpack.c.l.b16 %v1601
    %v1656 = vunpack.c.h.b16 %v1601
    %v1657 = vpack.c.b16 %v1627, %v1625
    %v1658 = vpack.c.b16 %v1628, %v1626
    %v1659 = vpack.c.b16 %v1631, %v1629
    %v1660 = vpack.c.b16 %v1632, %v1630
    %v1661 = vpack.c.b16 %v1635, %v1633
    %v1662 = vpack.c.b16 %v1636, %v1634
    %v1663 = vpack.c.b16 %v1639, %v1637
    %v1664 = vpack.c.b16 %v1640, %v1638
    %v1665 = vpack.c.b16 %v1643, %v1641
    %v1666 = vpack.c.b16 %v1644, %v1642
    %v1667 = vpack.c.b16 %v1647, %v1645
    %v1668 = vpack.c.b16 %v1648, %v1646
    %v1669 = vpack.c.b16 %v1651, %v1649
    %v1670 = vpack.c.b16 %v1652, %v1650
    %v1671 = vpack.c.b16 %v1655, %v1653
    %v1672 = vpack.c.b16 %v1656, %v1654
    %1689 = vmatpush.bf16.msra.mxu0 %v1671
    %1690 = vmatpush.bf16.msra.mxu0 %v1669
    %1691 = vmatpush.bf16.msra.mxu0 %v1667
    %1692 = vmatpush.bf16.msra.mxu0 %v1665
    %1693 = vmatpush.bf16.msra.mxu0 %v1663
    %1694 = vmatpush.bf16.msra.mxu0 %v1661
    %1695 = vmatpush.bf16.msra.mxu0 %v1659
    %1696 = vmatpush.bf16.msra.mxu0 %v1657
    %1697 = vmatmul.bf16.gmra.mxu0 %v1570
    %v1698 = vpop.f32.mrf.mxu0
    %v1699 = vadd.f32 %v1605, %v1698
    %v1700 = vpop.f32.mrf.mxu0
    %v1701 = vadd.f32 %v1605, %v1700
    %1702 = vmatmul.bf16.gmra.mxu0 %v1571
    %v1703 = vpop.f32.mrf.mxu0
    %v1704 = vadd.f32 %v1605, %v1703
    %v1705 = vpop.f32.mrf.mxu0
    %v1706 = vadd.f32 %v1605, %v1705
    %1707 = vmatmul.bf16.gmra.mxu0 %v1572
    %v1708 = vpop.f32.mrf.mxu0
    %v1709 = vadd.f32 %v1605, %v1708
    %v1710 = vpop.f32.mrf.mxu0
    %v1711 = vadd.f32 %v1605, %v1710
    %1712 = vmatmul.bf16.gmra.mxu0 %v1573
    %v1713 = vpop.f32.mrf.mxu0
    %v1714 = vadd.f32 %v1605, %v1713
    %v1715 = vpop.f32.mrf.mxu0
    %v1716 = vadd.f32 %v1605, %v1715
    %1717 = vmatmul.bf16.gmra.mxu0 %v1574
    %v1718 = vpop.f32.mrf.mxu0
    %v1719 = vadd.f32 %v1605, %v1718
    %v1720 = vpop.f32.mrf.mxu0
    %v1721 = vadd.f32 %v1605, %v1720
    %1722 = vmatmul.bf16.gmra.mxu0 %v1575
    %v1723 = vpop.f32.mrf.mxu0
    %v1724 = vadd.f32 %v1605, %v1723
    %v1725 = vpop.f32.mrf.mxu0
    %v1726 = vadd.f32 %v1605, %v1725
    %1727 = vmatmul.bf16.gmra.mxu0 %v1576
    %v1728 = vpop.f32.mrf.mxu0
    %v1729 = vadd.f32 %v1605, %v1728
    %v1730 = vpop.f32.mrf.mxu0
    %v1731 = vadd.f32 %v1605, %v1730
    %1732 = vmatmul.bf16.gmra.mxu0 %v1577
    %v1733 = vpop.f32.mrf.mxu0
    %v1734 = vadd.f32 %v1605, %v1733
    %v1735 = vpop.f32.mrf.mxu0
    %v1736 = vadd.f32 %v1605, %v1735
    %1737 = vmatmul.bf16.gmra.mxu0 %v1578
    %v1738 = vpop.f32.mrf.mxu0
    %v1739 = vadd.f32 %v1605, %v1738
    %v1740 = vpop.f32.mrf.mxu0
    %v1741 = vadd.f32 %v1605, %v1740
    %1742 = vmatmul.bf16.gmra.mxu0 %v1579
    %v1743 = vpop.f32.mrf.mxu0
    %v1744 = vadd.f32 %v1605, %v1743
    %v1745 = vpop.f32.mrf.mxu0
    %v1746 = vadd.f32 %v1605, %v1745
    %1747 = vmatmul.bf16.gmra.mxu0 %v1580
    %v1748 = vpop.f32.mrf.mxu0
    %v1749 = vadd.f32 %v1605, %v1748
    %v1750 = vpop.f32.mrf.mxu0
    %v1751 = vadd.f32 %v1605, %v1750
    %1752 = vmatmul.bf16.gmra.mxu0 %v1581
    %v1753 = vpop.f32.mrf.mxu0
    %v1754 = vadd.f32 %v1605, %v1753
    %v1755 = vpop.f32.mrf.mxu0
    %v1756 = vadd.f32 %v1605, %v1755
    %1757 = vmatmul.bf16.gmra.mxu0 %v1582
    %v1758 = vpop.f32.mrf.mxu0
    %v1759 = vadd.f32 %v1605, %v1758
    %v1760 = vpop.f32.mrf.mxu0
    %v1761 = vadd.f32 %v1605, %v1760
    %1762 = vmatmul.bf16.gmra.mxu0 %v1583
    %v1763 = vpop.f32.mrf.mxu0
    %v1764 = vadd.f32 %v1605, %v1763
    %v1765 = vpop.f32.mrf.mxu0
    %v1766 = vadd.f32 %v1605, %v1765
    %1767 = vmatmul.bf16.gmra.mxu0 %v1584
    %v1768 = vpop.f32.mrf.mxu0
    %v1769 = vadd.f32 %v1605, %v1768
    %v1770 = vpop.f32.mrf.mxu0
    %v1771 = vadd.f32 %v1605, %v1770
    %1772 = vmatmul.bf16.gmra.mxu0 %v1585
    %v1773 = vpop.f32.mrf.mxu0
    %v1774 = vadd.f32 %v1605, %v1773
    %v1775 = vpop.f32.mrf.mxu0
    %v1776 = vadd.f32 %v1605, %v1775
    %1777 = vdwg.mxu0
    %1778 = vmatpush.bf16.msra.mxu0 %v1672
    %1779 = vmatpush.bf16.msra.mxu0 %v1670
    %1780 = vmatpush.bf16.msra.mxu0 %v1668
    %1781 = vmatpush.bf16.msra.mxu0 %v1666
    %1782 = vmatpush.bf16.msra.mxu0 %v1664
    %1783 = vmatpush.bf16.msra.mxu0 %v1662
    %1784 = vmatpush.bf16.msra.mxu0 %v1660
    %1785 = vmatpush.bf16.msra.mxu0 %v1658
    %1786 = vmatmul.bf16.gmra.mxu0 %v1570
    %v1787 = vpop.f32.mrf.mxu0
    %v1788 = vadd.f32 %v1606, %v1787
    %v1789 = vpop.f32.mrf.mxu0
    %v1790 = vadd.f32 %v1606, %v1789
    %1791 = vmatmul.bf16.gmra.mxu0 %v1571
    %v1792 = vpop.f32.mrf.mxu0
    %v1793 = vadd.f32 %v1606, %v1792
    %v1794 = vpop.f32.mrf.mxu0
    %v1795 = vadd.f32 %v1606, %v1794
    %1796 = vmatmul.bf16.gmra.mxu0 %v1572
    %v1797 = vpop.f32.mrf.mxu0
    %v1798 = vadd.f32 %v1606, %v1797
    %v1799 = vpop.f32.mrf.mxu0
    %v1800 = vadd.f32 %v1606, %v1799
    %1801 = vmatmul.bf16.gmra.mxu0 %v1573
    %v1802 = vpop.f32.mrf.mxu0
    %v1803 = vadd.f32 %v1606, %v1802
    %v1804 = vpop.f32.mrf.mxu0
    %v1805 = vadd.f32 %v1606, %v1804
    %1806 = vmatmul.bf16.gmra.mxu0 %v1574
    %v1807 = vpop.f32.mrf.mxu0
    %v1808 = vadd.f32 %v1606, %v1807
    %v1809 = vpop.f32.mrf.mxu0
    %v1810 = vadd.f32 %v1606, %v1809
    %1811 = vmatmul.bf16.gmra.mxu0 %v1575
    %v1812 = vpop.f32.mrf.mxu0
    %v1813 = vadd.f32 %v1606, %v1812
    %v1814 = vpop.f32.mrf.mxu0
    %v1815 = vadd.f32 %v1606, %v1814
    %1816 = vmatmul.bf16.gmra.mxu0 %v1576
    %v1817 = vpop.f32.mrf.mxu0
    %v1818 = vadd.f32 %v1606, %v1817
    %v1819 = vpop.f32.mrf.mxu0
    %v1820 = vadd.f32 %v1606, %v1819
    %1821 = vmatmul.bf16.gmra.mxu0 %v1577
    %v1822 = vpop.f32.mrf.mxu0
    %v1823 = vadd.f32 %v1606, %v1822
    %v1824 = vpop.f32.mrf.mxu0
    %v1825 = vadd.f32 %v1606, %v1824
    %1826 = vmatmul.bf16.gmra.mxu0 %v1578
    %v1827 = vpop.f32.mrf.mxu0
    %v1828 = vadd.f32 %v1606, %v1827
    %v1829 = vpop.f32.mrf.mxu0
    %v1830 = vadd.f32 %v1606, %v1829
    %1831 = vmatmul.bf16.gmra.mxu0 %v1579
    %v1832 = vpop.f32.mrf.mxu0
    %v1833 = vadd.f32 %v1606, %v1832
    %v1834 = vpop.f32.mrf.mxu0
    %v1835 = vadd.f32 %v1606, %v1834
    %1836 = vmatmul.bf16.gmra.mxu0 %v1580
    %v1837 = vpop.f32.mrf.mxu0
    %v1838 = vadd.f32 %v1606, %v1837
    %v1839 = vpop.f32.mrf.mxu0
    %v1840 = vadd.f32 %v1606, %v1839
    %1841 = vmatmul.bf16.gmra.mxu0 %v1581
    %v1842 = vpop.f32.mrf.mxu0
    %v1843 = vadd.f32 %v1606, %v1842
    %v1844 = vpop.f32.mrf.mxu0
    %v1845 = vadd.f32 %v1606, %v1844
    %1846 = vmatmul.bf16.gmra.mxu0 %v1582
    %v1847 = vpop.f32.mrf.mxu0
    %v1848 = vadd.f32 %v1606, %v1847
    %v1849 = vpop.f32.mrf.mxu0
    %v1850 = vadd.f32 %v1606, %v1849
    %1851 = vmatmul.bf16.gmra.mxu0 %v1583
    %v1852 = vpop.f32.mrf.mxu0
    %v1853 = vadd.f32 %v1606, %v1852
    %v1854 = vpop.f32.mrf.mxu0
    %v1855 = vadd.f32 %v1606, %v1854
    %1856 = vmatmul.bf16.gmra.mxu0 %v1584
    %v1857 = vpop.f32.mrf.mxu0
    %v1858 = vadd.f32 %v1606, %v1857
    %v1859 = vpop.f32.mrf.mxu0
    %v1860 = vadd.f32 %v1606, %v1859
    %1861 = vmatmul.bf16.gmra.mxu0 %v1585
    %v1862 = vpop.f32.mrf.mxu0
    %v1863 = vadd.f32 %v1606, %v1862
    %v1864 = vpop.f32.mrf.mxu0
    %v1865 = vadd.f32 %v1606, %v1864
    %1866 = vdwg.mxu0
    %1867 = vst [vmem:[#allocation5] sm:$0xff] %v1699
    %1868 = vst [vmem:[#allocation5 + $0x8] sm:$0xff] %v1788
    %1869 = vst [vmem:[#allocation5 + $0x10] sm:$0xff] %v1701
    %1870 = vst [vmem:[#allocation5 + $0x18] sm:$0xff] %v1790
    %1871 = vst [vmem:[#allocation5 + $0x20] sm:$0xff] %v1704
    %1872 = vst [vmem:[#allocation5 + $0x28] sm:$0xff] %v1793
    %1873 = vst [vmem:[#allocation5 + $0x30] sm:$0xff] %v1706
    %1874 = vst [vmem:[#allocation5 + $0x38] sm:$0xff] %v1795
    %1875 = vst [vmem:[#allocation5 + $0x40] sm:$0xff] %v1709
    %1876 = vst [vmem:[#allocation5 + $0x48] sm:$0xff] %v1798
    %1877 = vst [vmem:[#allocation5 + $0x50] sm:$0xff] %v1711
    %1878 = vst [vmem:[#allocation5 + $0x58] sm:$0xff] %v1800
    %1879 = vst [vmem:[#allocation5 + $0x60] sm:$0xff] %v1714
    %1880 = vst [vmem:[#allocation5 + $0x68] sm:$0xff] %v1803
    %1881 = vst [vmem:[#allocation5 + $0x70] sm:$0xff] %v1716
    %1882 = vst [vmem:[#allocation5 + $0x78] sm:$0xff] %v1805
    %1883 = vst [vmem:[#allocation5 + $0x80] sm:$0xff] %v1719
    %1884 = vst [vmem:[#allocation5 + $0x88] sm:$0xff] %v1808
    %1885 = vst [vmem:[#allocation5 + $0x90] sm:$0xff] %v1721
    %1886 = vst [vmem:[#allocation5 + $0x98] sm:$0xff] %v1810
    %1887 = vst [vmem:[#allocation5 + $0xa0] sm:$0xff] %v1724
    %1888 = vst [vmem:[#allocation5 + $0xa8] sm:$0xff] %v1813
    %1889 = vst [vmem:[#allocation5 + $0xb0] sm:$0xff] %v1726
    %1890 = vst [vmem:[#allocation5 + $0xb8] sm:$0xff] %v1815
    %1891 = vst [vmem:[#allocation5 + $0xc0] sm:$0xff] %v1729
    %1892 = vst [vmem:[#allocation5 + $0xc8] sm:$0xff] %v1818
    %1893 = vst [vmem:[#allocation5 + $0xd0] sm:$0xff] %v1731
    %1894 = vst [vmem:[#allocation5 + $0xd8] sm:$0xff] %v1820
    %1895 = vst [vmem:[#allocation5 + $0xe0] sm:$0xff] %v1734
    %1896 = vst [vmem:[#allocation5 + $0xe8] sm:$0xff] %v1823
    %1897 = vst [vmem:[#allocation5 + $0xf0] sm:$0xff] %v1736
    %1898 = vst [vmem:[#allocation5 + $0xf8] sm:$0xff] %v1825
    %1899 = vst [vmem:[#allocation5 + $0x100] sm:$0xff] %v1739
    %1900 = vst [vmem:[#allocation5 + $0x108] sm:$0xff] %v1828
    %1901 = vst [vmem:[#allocation5 + $0x110] sm:$0xff] %v1741
    %1902 = vst [vmem:[#allocation5 + $0x118] sm:$0xff] %v1830
    %1903 = vst [vmem:[#allocation5 + $0x120] sm:$0xff] %v1744
    %1904 = vst [vmem:[#allocation5 + $0x128] sm:$0xff] %v1833
    %1905 = vst [vmem:[#allocation5 + $0x130] sm:$0xff] %v1746
    %1906 = vst [vmem:[#allocation5 + $0x138] sm:$0xff] %v1835
    %1907 = vst [vmem:[#allocation5 + $0x140] sm:$0xff] %v1749
    %1908 = vst [vmem:[#allocation5 + $0x148] sm:$0xff] %v1838
    %1909 = vst [vmem:[#allocation5 + $0x150] sm:$0xff] %v1751
    %1910 = vst [vmem:[#allocation5 + $0x158] sm:$0xff] %v1840
    %1911 = vst [vmem:[#allocation5 + $0x160] sm:$0xff] %v1754
    %1912 = vst [vmem:[#allocation5 + $0x168] sm:$0xff] %v1843
    %1913 = vst [vmem:[#allocation5 + $0x170] sm:$0xff] %v1756
    %1914 = vst [vmem:[#allocation5 + $0x178] sm:$0xff] %v1845
    %1915 = vst [vmem:[#allocation5 + $0x180] sm:$0xff] %v1759
    %1916 = vst [vmem:[#allocation5 + $0x188] sm:$0xff] %v1848
    %1917 = vst [vmem:[#allocation5 + $0x190] sm:$0xff] %v1761
    %1918 = vst [vmem:[#allocation5 + $0x198] sm:$0xff] %v1850
    %1919 = vst [vmem:[#allocation5 + $0x1a0] sm:$0xff] %v1764
    %1920 = vst [vmem:[#allocation5 + $0x1a8] sm:$0xff] %v1853
    %1921 = vst [vmem:[#allocation5 + $0x1b0] sm:$0xff] %v1766
    %1922 = vst [vmem:[#allocation5 + $0x1b8] sm:$0xff] %v1855
    %1923 = vst [vmem:[#allocation5 + $0x1c0] sm:$0xff] %v1769
    %1924 = vst [vmem:[#allocation5 + $0x1c8] sm:$0xff] %v1858
    %1925 = vst [vmem:[#allocation5 + $0x1d0] sm:$0xff] %v1771
    %1926 = vst [vmem:[#allocation5 + $0x1d8] sm:$0xff] %v1860
    %1927 = vst [vmem:[#allocation5 + $0x1e0] sm:$0xff] %v1774
    %1928 = vst [vmem:[#allocation5 + $0x1e8] sm:$0xff] %v1863
    %1929 = vst [vmem:[#allocation5 + $0x1f0] sm:$0xff] %v1776
    %1930 = vst [vmem:[#allocation5 + $0x1f8] sm:$0xff] %v1865
    %1931 = vst.msk [vmem:[#allocation6] sm:$0xff] %vm739, %v798
    %1932 = vst.msk [vmem:[#allocation6 + $0x8] sm:$0xff] %vm739, %v800
    %1933 = vst.msk [vmem:[#allocation6 + $0x10] sm:$0xff] %vm739, %v803
    %1934 = vst.msk [vmem:[#allocation6 + $0x18] sm:$0xff] %vm739, %v805
    %1935 = vst.msk [vmem:[#allocation6 + $0x20] sm:$0xff] %vm739, %v808
    %1936 = vst.msk [vmem:[#allocation6 + $0x28] sm:$0xff] %vm739, %v810
    %1937 = vst.msk [vmem:[#allocation6 + $0x30] sm:$0xff] %vm739, %v813
    %1938 = vst.msk [vmem:[#allocation6 + $0x38] sm:$0xff] %vm739, %v815
    %1939 = vst.msk [vmem:[#allocation6 + $0x40] sm:$0xff] %vm739, %v818
    %1940 = vst.msk [vmem:[#allocation6 + $0x48] sm:$0xff] %vm739, %v820
    %1941 = vst.msk [vmem:[#allocation6 + $0x50] sm:$0xff] %vm739, %v823
    %1942 = vst.msk [vmem:[#allocation6 + $0x58] sm:$0xff] %vm739, %v825
    %1943 = vst.msk [vmem:[#allocation6 + $0x60] sm:$0xff] %vm739, %v828
    %1944 = vst.msk [vmem:[#allocation6 + $0x68] sm:$0xff] %vm739, %v830
    %1945 = vst.msk [vmem:[#allocation6 + $0x70] sm:$0xff] %vm739, %v833
    %1946 = vst.msk [vmem:[#allocation6 + $0x78] sm:$0xff] %vm739, %v835
    %1947 = vst.msk [vmem:[#allocation6 + $0x80] sm:$0xff] %vm739, %v838
    %1948 = vst.msk [vmem:[#allocation6 + $0x88] sm:$0xff] %vm739, %v840
    %1949 = vst.msk [vmem:[#allocation6 + $0x90] sm:$0xff] %vm739, %v843
    %1950 = vst.msk [vmem:[#allocation6 + $0x98] sm:$0xff] %vm739, %v845
    %1951 = vst.msk [vmem:[#allocation6 + $0xa0] sm:$0xff] %vm739, %v848
    %1952 = vst.msk [vmem:[#allocation6 + $0xa8] sm:$0xff] %vm739, %v850
    %1953 = vst.msk [vmem:[#allocation6 + $0xb0] sm:$0xff] %vm739, %v853
    %1954 = vst.msk [vmem:[#allocation6 + $0xb8] sm:$0xff] %vm739, %v855
    %1955 = vst.msk [vmem:[#allocation6 + $0xc0] sm:$0xff] %vm739, %v858
    %1956 = vst.msk [vmem:[#allocation6 + $0xc8] sm:$0xff] %vm739, %v860
    %1957 = vst.msk [vmem:[#allocation6 + $0xd0] sm:$0xff] %vm739, %v863
    %1958 = vst.msk [vmem:[#allocation6 + $0xd8] sm:$0xff] %vm739, %v865
    %1959 = vst.msk [vmem:[#allocation6 + $0xe0] sm:$0xff] %vm739, %v868
    %1960 = vst.msk [vmem:[#allocation6 + $0xe8] sm:$0xff] %vm739, %v870
    %1961 = vst.msk [vmem:[#allocation6 + $0xf0] sm:$0xff] %vm739, %v873
    %1962 = vst.msk [vmem:[#allocation6 + $0xf8] sm:$0xff] %vm739, %v875
    %1995 = vrot.lane.b32.xlu0 %v1289, 64
    %v1996 = vpop.permute.xlu0 %1995
    %1997 = vrot.lane.b32.xlu0 %v1291, 64
    %v1998 = vpop.permute.xlu0 %1997
    %1999 = vrot.lane.b32.xlu0 %v1294, 64
    %v2000 = vpop.permute.xlu0 %1999
    %2001 = vrot.lane.b32.xlu0 %v1296, 64
    %v2002 = vpop.permute.xlu0 %2001
    %2003 = vrot.lane.b32.xlu0 %v1299, 64
    %v2004 = vpop.permute.xlu0 %2003
    %2005 = vrot.lane.b32.xlu0 %v1301, 64
    %v2006 = vpop.permute.xlu0 %2005
    %2007 = vrot.lane.b32.xlu0 %v1304, 64
    %v2008 = vpop.permute.xlu0 %2007
    %2009 = vrot.lane.b32.xlu0 %v1306, 64
    %v2010 = vpop.permute.xlu0 %2009
    %2011 = vrot.lane.b32.xlu0 %v1309, 64
    %v2012 = vpop.permute.xlu0 %2011
    %2013 = vrot.lane.b32.xlu0 %v1311, 64
    %v2014 = vpop.permute.xlu0 %2013
    %2015 = vrot.lane.b32.xlu0 %v1314, 64
    %v2016 = vpop.permute.xlu0 %2015
    %2017 = vrot.lane.b32.xlu0 %v1316, 64
    %v2018 = vpop.permute.xlu0 %2017
    %2019 = vrot.lane.b32.xlu0 %v1319, 64
    %v2020 = vpop.permute.xlu0 %2019
    %2021 = vrot.lane.b32.xlu0 %v1321, 64
    %v2022 = vpop.permute.xlu0 %2021
    %2023 = vrot.lane.b32.xlu0 %v1324, 64
    %v2024 = vpop.permute.xlu0 %2023
    %2025 = vrot.lane.b32.xlu0 %v1326, 64
    %v2026 = vpop.permute.xlu0 %2025
    %2027 = vrot.lane.b32.xlu0 %v1329, 64
    %v2028 = vpop.permute.xlu0 %2027
    %2029 = vrot.lane.b32.xlu0 %v1331, 64
    %v2030 = vpop.permute.xlu0 %2029
    %2031 = vrot.lane.b32.xlu0 %v1334, 64
    %v2032 = vpop.permute.xlu0 %2031
    %2033 = vrot.lane.b32.xlu0 %v1336, 64
    %v2034 = vpop.permute.xlu0 %2033
    %2035 = vrot.lane.b32.xlu0 %v1339, 64
    %v2036 = vpop.permute.xlu0 %2035
    %2037 = vrot.lane.b32.xlu0 %v1341, 64
    %v2038 = vpop.permute.xlu0 %2037
    %2039 = vrot.lane.b32.xlu0 %v1344, 64
    %v2040 = vpop.permute.xlu0 %2039
    %2041 = vrot.lane.b32.xlu0 %v1346, 64
    %v2042 = vpop.permute.xlu0 %2041
    %2043 = vrot.lane.b32.xlu0 %v1349, 64
    %v2044 = vpop.permute.xlu0 %2043
    %2045 = vrot.lane.b32.xlu0 %v1351, 64
    %v2046 = vpop.permute.xlu0 %2045
    %2047 = vrot.lane.b32.xlu0 %v1354, 64
    %v2048 = vpop.permute.xlu0 %2047
    %2049 = vrot.lane.b32.xlu0 %v1356, 64
    %v2050 = vpop.permute.xlu0 %2049
    %2051 = vrot.lane.b32.xlu0 %v1359, 64
    %v2052 = vpop.permute.xlu0 %2051
    %2053 = vrot.lane.b32.xlu0 %v1361, 64
    %v2054 = vpop.permute.xlu0 %2053
    %2055 = vrot.lane.b32.xlu0 %v1364, 64
    %v2056 = vpop.permute.xlu0 %2055
    %2057 = vrot.lane.b32.xlu0 %v1366, 64
    %v2058 = vpop.permute.xlu0 %2057
    %vm2091 = vcmask 785920
    %2092 = vst.msk [vmem:[#allocation6] sm:$0xff] %vm2091, %v1996
    %2093 = vst.msk [vmem:[#allocation6 + $0x8] sm:$0xff] %vm2091, %v1998
    %2094 = vst.msk [vmem:[#allocation6 + $0x10] sm:$0xff] %vm2091, %v2000
    %2095 = vst.msk [vmem:[#allocation6 + $0x18] sm:$0xff] %vm2091, %v2002
    %2096 = vst.msk [vmem:[#allocation6 + $0x20] sm:$0xff] %vm2091, %v2004
    %2097 = vst.msk [vmem:[#allocation6 + $0x28] sm:$0xff] %vm2091, %v2006
    %2098 = vst.msk [vmem:[#allocation6 + $0x30] sm:$0xff] %vm2091, %v2008
    %2099 = vst.msk [vmem:[#allocation6 + $0x38] sm:$0xff] %vm2091, %v2010
    %2100 = vst.msk [vmem:[#allocation6 + $0x40] sm:$0xff] %vm2091, %v2012
    %2101 = vst.msk [vmem:[#allocation6 + $0x48] sm:$0xff] %vm2091, %v2014
    %2102 = vst.msk [vmem:[#allocation6 + $0x50] sm:$0xff] %vm2091, %v2016
    %2103 = vst.msk [vmem:[#allocation6 + $0x58] sm:$0xff] %vm2091, %v2018
    %2104 = vst.msk [vmem:[#allocation6 + $0x60] sm:$0xff] %vm2091, %v2020
    %2105 = vst.msk [vmem:[#allocation6 + $0x68] sm:$0xff] %vm2091, %v2022
    %2106 = vst.msk [vmem:[#allocation6 + $0x70] sm:$0xff] %vm2091, %v2024
    %2107 = vst.msk [vmem:[#allocation6 + $0x78] sm:$0xff] %vm2091, %v2026
    %2108 = vst.msk [vmem:[#allocation6 + $0x80] sm:$0xff] %vm2091, %v2028
    %2109 = vst.msk [vmem:[#allocation6 + $0x88] sm:$0xff] %vm2091, %v2030
    %2110 = vst.msk [vmem:[#allocation6 + $0x90] sm:$0xff] %vm2091, %v2032
    %2111 = vst.msk [vmem:[#allocation6 + $0x98] sm:$0xff] %vm2091, %v2034
    %2112 = vst.msk [vmem:[#allocation6 + $0xa0] sm:$0xff] %vm2091, %v2036
    %2113 = vst.msk [vmem:[#allocation6 + $0xa8] sm:$0xff] %vm2091, %v2038
    %2114 = vst.msk [vmem:[#allocation6 + $0xb0] sm:$0xff] %vm2091, %v2040
    %2115 = vst.msk [vmem:[#allocation6 + $0xb8] sm:$0xff] %vm2091, %v2042
    %2116 = vst.msk [vmem:[#allocation6 + $0xc0] sm:$0xff] %vm2091, %v2044
    %2117 = vst.msk [vmem:[#allocation6 + $0xc8] sm:$0xff] %vm2091, %v2046
    %2118 = vst.msk [vmem:[#allocation6 + $0xd0] sm:$0xff] %vm2091, %v2048
    %2119 = vst.msk [vmem:[#allocation6 + $0xd8] sm:$0xff] %vm2091, %v2050
    %2120 = vst.msk [vmem:[#allocation6 + $0xe0] sm:$0xff] %vm2091, %v2052
    %2121 = vst.msk [vmem:[#allocation6 + $0xe8] sm:$0xff] %vm2091, %v2054
    %2122 = vst.msk [vmem:[#allocation6 + $0xf0] sm:$0xff] %vm2091, %v2056
    %2123 = vst.msk [vmem:[#allocation6 + $0xf8] sm:$0xff] %vm2091, %v2058
    %vm2124 = vcmask 1048320
    %2125 = vst.msk [vmem:[#allocation6] sm:$0xff] %vm2124, 0.0
    %2126 = vst.msk [vmem:[#allocation6 + $0x8] sm:$0xff] %vm2124, 0.0
    %2127 = vst.msk [vmem:[#allocation6 + $0x10] sm:$0xff] %vm2124, 0.0
    %2128 = vst.msk [vmem:[#allocation6 + $0x18] sm:$0xff] %vm2124, 0.0
    %2129 = vst.msk [vmem:[#allocation6 + $0x20] sm:$0xff] %vm2124, 0.0
    %2130 = vst.msk [vmem:[#allocation6 + $0x28] sm:$0xff] %vm2124, 0.0
    %2131 = vst.msk [vmem:[#allocation6 + $0x30] sm:$0xff] %vm2124, 0.0
    %2132 = vst.msk [vmem:[#allocation6 + $0x38] sm:$0xff] %vm2124, 0.0
    %2133 = vst.msk [vmem:[#allocation6 + $0x40] sm:$0xff] %vm2124, 0.0
    %2134 = vst.msk [vmem:[#allocation6 + $0x48] sm:$0xff] %vm2124, 0.0
    %2135 = vst.msk [vmem:[#allocation6 + $0x50] sm:$0xff] %vm2124, 0.0
    %2136 = vst.msk [vmem:[#allocation6 + $0x58] sm:$0xff] %vm2124, 0.0
    %2137 = vst.msk [vmem:[#allocation6 + $0x60] sm:$0xff] %vm2124, 0.0
    %2138 = vst.msk [vmem:[#allocation6 + $0x68] sm:$0xff] %vm2124, 0.0
    %2139 = vst.msk [vmem:[#allocation6 + $0x70] sm:$0xff] %vm2124, 0.0
    %2140 = vst.msk [vmem:[#allocation6 + $0x78] sm:$0xff] %vm2124, 0.0
    %2141 = vst.msk [vmem:[#allocation6 + $0x80] sm:$0xff] %vm2124, 0.0
    %2142 = vst.msk [vmem:[#allocation6 + $0x88] sm:$0xff] %vm2124, 0.0
    %2143 = vst.msk [vmem:[#allocation6 + $0x90] sm:$0xff] %vm2124, 0.0
    %2144 = vst.msk [vmem:[#allocation6 + $0x98] sm:$0xff] %vm2124, 0.0
    %2145 = vst.msk [vmem:[#allocation6 + $0xa0] sm:$0xff] %vm2124, 0.0
    %2146 = vst.msk [vmem:[#allocation6 + $0xa8] sm:$0xff] %vm2124, 0.0
    %2147 = vst.msk [vmem:[#allocation6 + $0xb0] sm:$0xff] %vm2124, 0.0
    %2148 = vst.msk [vmem:[#allocation6 + $0xb8] sm:$0xff] %vm2124, 0.0
    %2149 = vst.msk [vmem:[#allocation6 + $0xc0] sm:$0xff] %vm2124, 0.0
    %2150 = vst.msk [vmem:[#allocation6 + $0xc8] sm:$0xff] %vm2124, 0.0
    %2151 = vst.msk [vmem:[#allocation6 + $0xd0] sm:$0xff] %vm2124, 0.0
    %2152 = vst.msk [vmem:[#allocation6 + $0xd8] sm:$0xff] %vm2124, 0.0
    %2153 = vst.msk [vmem:[#allocation6 + $0xe0] sm:$0xff] %vm2124, 0.0
    %2154 = vst.msk [vmem:[#allocation6 + $0xe8] sm:$0xff] %vm2124, 0.0
    %2155 = vst.msk [vmem:[#allocation6 + $0xf0] sm:$0xff] %vm2124, 0.0
    %2156 = vst.msk [vmem:[#allocation6 + $0xf8] sm:$0xff] %vm2124, 0.0
    // Predicated region
    $region42: #{tpu_custom_call.1} parent=1 // pred_check
      _
    $region43: #{tpu_custom_call.1} parent=1 // pred_check_branch
      %2158 = sbr.rel (0) target = $region45
    $region44: #{tpu_custom_call.1} parent=1 // pred_region
      %2160 = vsyncadd [#allocation4], 0
      %s2161 = sshll.u32 [#allocation5], 4
      %s2162 = int_to_ptr.vmem [resolvable:$true] %s2161
      %s2163 = sshll.u32 %s9, 4
      %s2164 = int_to_ptr.hbm [resolvable:$true] %s2163
      %2169 = dma.vmem_to_hbm [thread:$0]  %s2162, 8192, %s2164, [#allocation4], 256, 256, 16
    $region45: #{tpu_custom_call.1} parent=1 // pred_fallthru
      _
    // Predicated region
    $region46: #{tpu_custom_call.1} parent=1 // pred_check
      _
    $region47: #{tpu_custom_call.1} parent=1 // pred_check_branch
      %2171 = sbr.rel (0) target = $region49
    $region48: #{tpu_custom_call.1} parent=1 // pred_region
      %2173 = vsyncadd [#allocation7], 0
      %s2174 = sshll.u32 [#allocation6], 4
      %s2175 = int_to_ptr.vmem [resolvable:$true] %s2174
      %s2176 = sshll.u32 %s10, 4
      %s2177 = int_to_ptr.hbm [resolvable:$true] %s2176
      %2182 = dma.vmem_to_hbm [thread:$0]  %s2175, 4096, %s2177, [#allocation7], 128, 128, 8
    $region49: #{tpu_custom_call.1} parent=1 // pred_fallthru
      _
    // Predicated region
    $region50: #{tpu_custom_call.1} parent=1 // pred_check
      _
    $region51: #{tpu_custom_call.1} parent=1 // pred_check_branch
      %2184 = sbr.rel (0) target = $region53
    $region52: #{tpu_custom_call.1} parent=1 // pred_region
      %2186 = dma.done [#allocation4], 8192
    $region53: #{tpu_custom_call.1} parent=1 // pred_fallthru
      _
    // Predicated region
    $region54: #{tpu_custom_call.1} parent=1 // pred_check
      _
    $region55: #{tpu_custom_call.1} parent=1 // pred_check_branch
      %2188 = sbr.rel (0) target = $region57
    $region56: #{tpu_custom_call.1} parent=1 // pred_region
      %2190 = dma.done [#allocation7], 4096
    $region57: #{tpu_custom_call.1} parent=1 // pred_fallthru
      _
    %2191 = vsyncpa [#allocation3], 1
    %2192 = vsyncpa [#allocation4], 1
    %2193 = vsyncpa [#allocation7], 1

</llo_original>
